<compile_context>
chip_gen: v5e
topology: v5e:2x2
jax: 0.10.0
libtpu: 0.0.40
codegen_flags: <defaults>
</compile_context>

<pallas_src>
import functools

import jax
import jax.numpy as jnp
from jax import lax
from jax.experimental import pallas as pl
from jax.experimental.pallas import tpu as pltpu

KERNEL_SIZE = 7
PAD = 3                       # padding for kernel_size == 7
KS2 = KERNEL_SIZE * KERNEL_SIZE


def _spatial_attention_kernel(w_ref, mask_ref, x_ref, o_ref,
                              pe_sum_ref, pe_max_ref, *,
                              c, h, w, hw, tb, l0p):
    """One grid step = `tb` whole batch elements, vectorized over the tile.

    w_ref   : SMEM (2*49,) f32 — conv weights; mean-path taps pre-scaled by 1/C
              (row-major: cmap*49 + ki*7 + kj).
    mask_ref: VMEM (7, l0p) f32 — column-validity mask per horizontal tap kj
              (also zero on the l0p tail padding).
    x_ref   : VMEM (tb, C, HW) — lane-dense flattened spatial dim.
    o_ref   : VMEM (tb, C, HW)
    pe_*_ref: VMEM (tb, l0p + 2*PAD) f32 scratch — zero-padded pooled maps.
    """
    off = PAD * w + PAD                     # start of valid data inside pe

    x = x_ref[...]                          # (tb, c, hw), native dtype

    # --- channel reductions, vectorized over the whole batch tile ---------
    sum_map = jnp.sum(x, axis=1, dtype=jnp.float32)        # (tb, hw) f32
    max_map = jnp.max(x, axis=1).astype(jnp.float32)       # (tb, hw) f32

    # --- zero-padded pooled maps written into VMEM scratch ----------------
    pe_sum_ref[...] = jnp.zeros_like(pe_sum_ref)
    pe_max_ref[...] = jnp.zeros_like(pe_max_ref)
    pe_sum_ref[:, pl.ds(off, hw)] = sum_map
    pe_max_ref[:, pl.ds(off, hw)] = max_map

    # conv[n] = sum_{ki,kj} W[.,ki,kj] * mask[kj][n+ki*W] * pe[n + ki*W + kj]
    # kj-outer loop: each shifted copy is extracted+masked once (14 vector
    # muls total) and accumulated into 7 row accumulators with scalar splats.
    r = [jnp.zeros((tb, l0p), jnp.float32) for _ in range(KERNEL_SIZE)]
    for kj in range(KERNEL_SIZE):
        m_kj = mask_ref[pl.ds(kj, 1), :]                            # (1, l0p)
        ms_sum = pe_sum_ref[:, pl.ds(kj, l0p)] * m_kj               # (tb, l0p)
        ms_max = pe_max_ref[:, pl.ds(kj, l0p)] * m_kj
        for ki in range(KERNEL_SIZE):
            tap = ki * KERNEL_SIZE + kj
            r[ki] = r[ki] + w_ref[tap] * ms_sum + w_ref[KS2 + tap] * ms_max

    conv = jnp.zeros((tb, hw), jnp.float32)
    for ki in range(KERNEL_SIZE):
        conv = conv + r[ki][:, ki * w: ki * w + hw]

    att = jax.nn.sigmoid(conv)                                      # (tb, hw)
    # broadcasted x * att in x's native dtype (bf16 stays bf16 on v6e/v7x)
    o_ref[...] = (x * att.astype(x.dtype)[:, None, :]).astype(o_ref.dtype)


def spatial_attention(x, weight):
    """x: (B, C, H, W); weight: (1, 2, 7, 7) Conv2d weight (no bias)."""
    assert weight.shape == (1, 2, KERNEL_SIZE, KERNEL_SIZE)
    b, c, h, w = x.shape
    hw = h * w
    l0 = hw + 2 * PAD * w                      # vertically padded flat length
    l0p = ((l0 + 127) // 128) * 128            # pad to full lane tiles
    pe_len = l0p + 2 * PAD

    # ---- wrapper-side (XLA) preprocessing, tiny and done once per call ----
    x_flat = x.reshape(b, c, hw)               # lane-dense, free reshape

    # conv weights flattened; mean-path pre-scaled by 1/C so the kernel only
    # needs a channel *sum*.  98 scalars -> SMEM.
    w2 = weight.astype(jnp.float32).reshape(2, KS2)
    w2 = w2 * jnp.array([[1.0 / c], [1.0]], jnp.float32)
    w_flat = w2.reshape(2 * KS2)

    # column-validity mask per horizontal tap kj, padded to l0p lanes
    pos = jnp.arange(l0p, dtype=jnp.int32)
    col = pos % w
    kj_idx = jnp.arange(KERNEL_SIZE, dtype=jnp.int32)
    shifted = col[None, :] + kj_idx[:, None] - PAD                  # (7, l0p)
    mask = ((shifted >= 0) & (shifted < w) & (pos[None, :] < l0))
    mask = mask.astype(jnp.float32)                                 # (7, l0p)

    # Batch-tile packing: amortize the ~0.35us/step fixed overhead with a
    # ~4 MiB block cap, but keep at least 2 grid steps whenever B >= 2 so
    # both v7x TensorCores get work (v5e/v6e are single-TC, unaffected).
    bytes_per_elem = c * hw * x.dtype.itemsize
    pack_cap = 4 << 20
    max_tb = b if b == 1 else b // 2
    tb = 1
    for cand in range(1, min(b, 16) + 1):
        if b % cand == 0 and cand <= max_tb and cand * bytes_per_elem <= pack_cap:
            tb = cand
    grid = (b // tb,)

    # TODO(synk): for very large C*H*W (v7x: 64 MiB VMEM/TC) add a channel-
    # tile grid axis (running sum/max pass + second multiply pass) or an
    # H-tile axis with a 3-row halo instead of whole-element blocks.
    block_bytes = tb * bytes_per_elem
    vmem_needed = (4 * block_bytes                 # in + out, double-buffered
                   + 2 * mask.size * 4             # resident mask (x2 buffers)
                   + 2 * tb * pe_len * 4           # scratch maps
                   + (8 << 20))                    # conv temporaries + headroom
    vmem_limit = int(min(max(vmem_needed, 32 << 20), 48 << 20))

    cost = pl.CostEstimate(
        flops=int(b * (3 * c * hw + 210 * l0p + 7 * hw)),
        transcendentals=int(b * hw),
        bytes_accessed=int(2 * b * c * hw * x.dtype.itemsize + mask.size * 4),
    )

    kernel = functools.partial(
        _spatial_attention_kernel,
        c=c, h=h, w=w, hw=hw, tb=tb, l0p=l0p)

    out_flat = pl.pallas_call(
        kernel,
        out_shape=jax.ShapeDtypeStruct((b, c, hw), x.dtype),
        grid=grid,
        in_specs=[
            pl.BlockSpec(memory_space=pltpu.MemorySpace.SMEM),       # weights
            pl.BlockSpec((KERNEL_SIZE, l0p), lambda i: (0, 0)),      # mask
            pl.BlockSpec((tb, c, hw), lambda i: (i, 0, 0)),          # x
        ],
        out_specs=pl.BlockSpec((tb, c, hw), lambda i: (i, 0, 0)),
        scratch_shapes=[
            pltpu.VMEM((tb, pe_len), jnp.float32),
            pltpu.VMEM((tb, pe_len), jnp.float32),
        ],
        compiler_params=pltpu.CompilerParams(
            dimension_semantics=("parallel",),
            vmem_limit_bytes=vmem_limit,
        ),
        cost_estimate=cost,
    )(w_flat, mask, x_flat)

    return out_flat.reshape(b, c, h, w)


def spatial_attention_ref(x, weight):
    """Pure-JAX reference matching PyTorch semantics."""
    mean_map = jnp.mean(x, axis=1, keepdims=True)
    max_map = jnp.max(x, axis=1, keepdims=True)
    cat = jnp.concatenate([mean_map, max_map], axis=1)               # (B,2,H,W)
    conv = lax.conv_general_dilated(
        cat, weight,
        window_strides=(1, 1),
        padding=[(PAD, PAD), (PAD, PAD)],
        dimension_numbers=("NCHW", "OIHW", "NCHW"),
        precision=lax.Precision.HIGHEST,
    )                                                                # (B,1,H,W)
    return x * jax.nn.sigmoid(conv)


if __name__ == "__main__":
    key = jax.random.PRNGKey(0)
    kx, kw = jax.random.split(key)

    # Primary small test (matches the module's expected tiny shapes).
    B, C, H, W = 2, 4, 16, 16
    x = jax.random.normal(kx, (B, C, H, W), dtype=jnp.float32)
    weight = 0.1 * jax.random.normal(kw, (1, 2, 7, 7), dtype=jnp.float32)

    out = spatial_attention(x, weight)
    out = jax.block_until_ready(out)
    ref = spatial_attention_ref(x, weight)
    assert out.shape == (B, C, H, W)
    assert jnp.allclose(out, ref, atol=1e-5, rtol=1e-5), "mismatch vs reference"

    # Secondary check: exercises the vectorized batch tile (tb=2) and a
    # non-128-multiple flattened spatial length (lane padding path).
    B2, C2, H2, W2 = 4, 8, 20, 20
    x2 = jax.random.normal(kx, (B2, C2, H2, W2), dtype=jnp.float32)
    out2 = jax.block_until_ready(spatial_attention(x2, weight))
    ref2 = spatial_attention_ref(x2, weight)
    assert jnp.allclose(out2, ref2, atol=1e-5, rtol=1e-5), "mismatch vs reference (case 2)"

    print("KERNEL_OK")
</pallas_src>

<mosaic_0001>
module attributes {stable_mosaic.version = 11 : i64} {
  func.func @_spatial_attention_kernel(%arg0: i32, %arg1: memref<98xf32, #tpu.memory_space<smem>>, %arg2: memref<7x384xf32, #tpu.memory_space<vmem>>, %arg3: memref<1x4x256xf32, #tpu.memory_space<vmem>>, %arg4: memref<1x4x256xf32, #tpu.memory_space<vmem>>, %arg5: memref<1x390xf32, #tpu.memory_space<vmem>>, %arg6: memref<1x390xf32, #tpu.memory_space<vmem>>) attributes {dimension_semantics = [#tpu.dimension_semantics<parallel>], iteration_bounds = array<i64: 2>, scalar_prefetch = 0 : i64, scratch_operands = 2 : i64, tpu.core_type = #tpu.core_type<tc>, window_params = [{transform_indices = @transform_0, window_bounds = array<i64: 98>}, {pipeline_mode = #tpu.pipeline_mode<synchronous>, transform_indices = @transform_1, window_bounds = array<i64: 7, 384>}, {transform_indices = @transform_2, window_bounds = array<i64: 1, 4, 256>}, {transform_indices = @transform_3, window_bounds = array<i64: 1, 4, 256>}]} {
    %c0 = arith.constant 0 : index
    %c0_0 = arith.constant 0 : index
    %c0_1 = arith.constant 0 : index
    %0 = vector.load %arg3[%c0, %c0_0, %c0_1] : memref<1x4x256xf32, #tpu.memory_space<vmem>>, vector<1x4x256xf32>
    %cst = arith.constant dense<0.000000e+00> : vector<1x256xf32>
    %1 = vector.multi_reduction <add>, %0, %cst [1] : vector<1x4x256xf32> to vector<1x256xf32>
    %cst_2 = arith.constant dense<0xFF800000> : vector<1x256xf32>
    %2 = vector.multi_reduction <maximumf>, %0, %cst_2 [1] : vector<1x4x256xf32> to vector<1x256xf32>
    %cst_3 = arith.constant 0.000000e+00 : f32
    %3 = vector.broadcast %cst_3 : f32 to vector<1x390xf32>
    %c0_4 = arith.constant 0 : index
    %c0_5 = arith.constant 0 : index
    %4 = vector.load %arg5[%c0_4, %c0_5] : memref<1x390xf32, #tpu.memory_space<vmem>>, vector<1x390xf32>
    tpu.vector_store %arg5[%c0_4, %c0_5], %3 {strides = array<i32>} : memref<1x390xf32, #tpu.memory_space<vmem>>, vector<1x390xf32>,
    %cst_6 = arith.constant 0.000000e+00 : f32
    %5 = vector.broadcast %cst_6 : f32 to vector<1x390xf32>
    %c0_7 = arith.constant 0 : index
    %c0_8 = arith.constant 0 : index
    %6 = vector.load %arg6[%c0_7, %c0_8] : memref<1x390xf32, #tpu.memory_space<vmem>>, vector<1x390xf32>
    tpu.vector_store %arg6[%c0_7, %c0_8], %5 {strides = array<i32>} : memref<1x390xf32, #tpu.memory_space<vmem>>, vector<1x390xf32>,
    %c0_9 = arith.constant 0 : index
    %c51 = arith.constant 51 : index
    %7 = vector.load %arg5[%c0_9, %c51] : memref<1x390xf32, #tpu.memory_space<vmem>>, vector<1x256xf32>
    tpu.vector_store %arg5[%c0_9, %c51], %1 {strides = array<i32>} : memref<1x390xf32, #tpu.memory_space<vmem>>, vector<1x256xf32>,
    %c0_10 = arith.constant 0 : index
    %c51_11 = arith.constant 51 : index
    %8 = vector.load %arg6[%c0_10, %c51_11] : memref<1x390xf32, #tpu.memory_space<vmem>>, vector<1x256xf32>
    tpu.vector_store %arg6[%c0_10, %c51_11], %2 {strides = array<i32>} : memref<1x390xf32, #tpu.memory_space<vmem>>, vector<1x256xf32>,
    %cst_12 = arith.constant 0.000000e+00 : f32
    %9 = vector.broadcast %cst_12 : f32 to vector<1x384xf32>
    %cst_13 = arith.constant 0.000000e+00 : f32
    %10 = vector.broadcast %cst_13 : f32 to vector<1x384xf32>
    %cst_14 = arith.constant 0.000000e+00 : f32
    %11 = vector.broadcast %cst_14 : f32 to vector<1x384xf32>
    %cst_15 = arith.constant 0.000000e+00 : f32
    %12 = vector.broadcast %cst_15 : f32 to vector<1x384xf32>
    %cst_16 = arith.constant 0.000000e+00 : f32
    %13 = vector.broadcast %cst_16 : f32 to vector<1x384xf32>
    %cst_17 = arith.constant 0.000000e+00 : f32
    %14 = vector.broadcast %cst_17 : f32 to vector<1x384xf32>
    %cst_18 = arith.constant 0.000000e+00 : f32
    %15 = vector.broadcast %cst_18 : f32 to vector<1x384xf32>
    %c0_19 = arith.constant 0 : index
    %c0_20 = arith.constant 0 : index
    %16 = vector.load %arg2[%c0_19, %c0_20] : memref<7x384xf32, #tpu.memory_space<vmem>>, vector<1x384xf32>
    %c0_21 = arith.constant 0 : index
    %c0_22 = arith.constant 0 : index
    %17 = vector.load %arg5[%c0_21, %c0_22] : memref<1x390xf32, #tpu.memory_space<vmem>>, vector<1x384xf32>
    %18 = arith.mulf %17, %16 : vector<1x384xf32>
    %c0_23 = arith.constant 0 : index
    %c0_24 = arith.constant 0 : index
    %19 = vector.load %arg6[%c0_23, %c0_24] : memref<1x390xf32, #tpu.memory_space<vmem>>, vector<1x384xf32>
    %20 = arith.mulf %19, %16 : vector<1x384xf32>
    %c0_25 = arith.constant 0 : index
    %21 = memref.load %arg1[%c0_25] : memref<98xf32, #tpu.memory_space<smem>>
    %22 = vector.broadcast %21 : f32 to vector<1x384xf32>
    %23 = arith.mulf %22, %18 : vector<1x384xf32>
    %24 = arith.addf %9, %23 : vector<1x384xf32>
    %c49 = arith.constant 49 : index
    %25 = memref.load %arg1[%c49] : memref<98xf32, #tpu.memory_space<smem>>
    %26 = vector.broadcast %25 : f32 to vector<1x384xf32>
    %27 = arith.mulf %26, %20 : vector<1x384xf32>
    %28 = arith.addf %24, %27 : vector<1x384xf32>
    %c7 = arith.constant 7 : index
    %29 = memref.load %arg1[%c7] : memref<98xf32, #tpu.memory_space<smem>>
    %30 = vector.broadcast %29 : f32 to vector<1x384xf32>
    %31 = arith.mulf %30, %18 : vector<1x384xf32>
    %32 = arith.addf %10, %31 : vector<1x384xf32>
    %c56 = arith.constant 56 : index
    %33 = memref.load %arg1[%c56] : memref<98xf32, #tpu.memory_space<smem>>
    %34 = vector.broadcast %33 : f32 to vector<1x384xf32>
    %35 = arith.mulf %34, %20 : vector<1x384xf32>
    %36 = arith.addf %32, %35 : vector<1x384xf32>
    %c14 = arith.constant 14 : index
    %37 = memref.load %arg1[%c14] : memref<98xf32, #tpu.memory_space<smem>>
    %38 = vector.broadcast %37 : f32 to vector<1x384xf32>
    %39 = arith.mulf %38, %18 : vector<1x384xf32>
    %40 = arith.addf %11, %39 : vector<1x384xf32>
    %c63 = arith.constant 63 : index
    %41 = memref.load %arg1[%c63] : memref<98xf32, #tpu.memory_space<smem>>
    %42 = vector.broadcast %41 : f32 to vector<1x384xf32>
    %43 = arith.mulf %42, %20 : vector<1x384xf32>
    %44 = arith.addf %40, %43 : vector<1x384xf32>
    %c21 = arith.constant 21 : index
    %45 = memref.load %arg1[%c21] : memref<98xf32, #tpu.memory_space<smem>>
    %46 = vector.broadcast %45 : f32 to vector<1x384xf32>
    %47 = arith.mulf %46, %18 : vector<1x384xf32>
    %48 = arith.addf %12, %47 : vector<1x384xf32>
    %c70 = arith.constant 70 : index
    %49 = memref.load %arg1[%c70] : memref<98xf32, #tpu.memory_space<smem>>
    %50 = vector.broadcast %49 : f32 to vector<1x384xf32>
    %51 = arith.mulf %50, %20 : vector<1x384xf32>
    %52 = arith.addf %48, %51 : vector<1x384xf32>
    %c28 = arith.constant 28 : index
    %53 = memref.load %arg1[%c28] : memref<98xf32, #tpu.memory_space<smem>>
    %54 = vector.broadcast %53 : f32 to vector<1x384xf32>
    %55 = arith.mulf %54, %18 : vector<1x384xf32>
    %56 = arith.addf %13, %55 : vector<1x384xf32>
    %c77 = arith.constant 77 : index
    %57 = memref.load %arg1[%c77] : memref<98xf32, #tpu.memory_space<smem>>
    %58 = vector.broadcast %57 : f32 to vector<1x384xf32>
    %59 = arith.mulf %58, %20 : vector<1x384xf32>
    %60 = arith.addf %56, %59 : vector<1x384xf32>
    %c35 = arith.constant 35 : index
    %61 = memref.load %arg1[%c35] : memref<98xf32, #tpu.memory_space<smem>>
    %62 = vector.broadcast %61 : f32 to vector<1x384xf32>
    %63 = arith.mulf %62, %18 : vector<1x384xf32>
    %64 = arith.addf %14, %63 : vector<1x384xf32>
    %c84 = arith.constant 84 : index
    %65 = memref.load %arg1[%c84] : memref<98xf32, #tpu.memory_space<smem>>
    %66 = vector.broadcast %65 : f32 to vector<1x384xf32>
    %67 = arith.mulf %66, %20 : vector<1x384xf32>
    %68 = arith.addf %64, %67 : vector<1x384xf32>
    %c42 = arith.constant 42 : index
    %69 = memref.load %arg1[%c42] : memref<98xf32, #tpu.memory_space<smem>>
    %70 = vector.broadcast %69 : f32 to vector<1x384xf32>
    %71 = arith.mulf %70, %18 : vector<1x384xf32>
    %72 = arith.addf %15, %71 : vector<1x384xf32>
    %c91 = arith.constant 91 : index
    %73 = memref.load %arg1[%c91] : memref<98xf32, #tpu.memory_space<smem>>
    %74 = vector.broadcast %73 : f32 to vector<1x384xf32>
    %75 = arith.mulf %74, %20 : vector<1x384xf32>
    %76 = arith.addf %72, %75 : vector<1x384xf32>
    %c1 = arith.constant 1 : index
    %c0_26 = arith.constant 0 : index
    %77 = vector.load %arg2[%c1, %c0_26] : memref<7x384xf32, #tpu.memory_space<vmem>>, vector<1x384xf32>
    %c0_27 = arith.constant 0 : index
    %c1_28 = arith.constant 1 : index
    %78 = vector.load %arg5[%c0_27, %c1_28] : memref<1x390xf32, #tpu.memory_space<vmem>>, vector<1x384xf32>
    %79 = arith.mulf %78, %77 : vector<1x384xf32>
    %c0_29 = arith.constant 0 : index
    %c1_30 = arith.constant 1 : index
    %80 = vector.load %arg6[%c0_29, %c1_30] : memref<1x390xf32, #tpu.memory_space<vmem>>, vector<1x384xf32>
    %81 = arith.mulf %80, %77 : vector<1x384xf32>
    %c1_31 = arith.constant 1 : index
    %82 = memref.load %arg1[%c1_31] : memref<98xf32, #tpu.memory_space<smem>>
    %83 = vector.broadcast %82 : f32 to vector<1x384xf32>
    %84 = arith.mulf %83, %79 : vector<1x384xf32>
    %85 = arith.addf %28, %84 : vector<1x384xf32>
    %c50 = arith.constant 50 : index
    %86 = memref.load %arg1[%c50] : memref<98xf32, #tpu.memory_space<smem>>
    %87 = vector.broadcast %86 : f32 to vector<1x384xf32>
    %88 = arith.mulf %87, %81 : vector<1x384xf32>
    %89 = arith.addf %85, %88 : vector<1x384xf32>
    %c8 = arith.constant 8 : index
    %90 = memref.load %arg1[%c8] : memref<98xf32, #tpu.memory_space<smem>>
    %91 = vector.broadcast %90 : f32 to vector<1x384xf32>
    %92 = arith.mulf %91, %79 : vector<1x384xf32>
    %93 = arith.addf %36, %92 : vector<1x384xf32>
    %c57 = arith.constant 57 : index
    %94 = memref.load %arg1[%c57] : memref<98xf32, #tpu.memory_space<smem>>
    %95 = vector.broadcast %94 : f32 to vector<1x384xf32>
    %96 = arith.mulf %95, %81 : vector<1x384xf32>
    %97 = arith.addf %93, %96 : vector<1x384xf32>
    %c15 = arith.constant 15 : index
    %98 = memref.load %arg1[%c15] : memref<98xf32, #tpu.memory_space<smem>>
    %99 = vector.broadcast %98 : f32 to vector<1x384xf32>
    %100 = arith.mulf %99, %79 : vector<1x384xf32>
    %101 = arith.addf %44, %100 : vector<1x384xf32>
    %c64 = arith.constant 64 : index
    %102 = memref.load %arg1[%c64] : memref<98xf32, #tpu.memory_space<smem>>
    %103 = vector.broadcast %102 : f32 to vector<1x384xf32>
    %104 = arith.mulf %103, %81 : vector<1x384xf32>
    %105 = arith.addf %101, %104 : vector<1x384xf32>
    %c22 = arith.constant 22 : index
    %106 = memref.load %arg1[%c22] : memref<98xf32, #tpu.memory_space<smem>>
    %107 = vector.broadcast %106 : f32 to vector<1x384xf32>
    %108 = arith.mulf %107, %79 : vector<1x384xf32>
    %109 = arith.addf %52, %108 : vector<1x384xf32>
    %c71 = arith.constant 71 : index
    %110 = memref.load %arg1[%c71] : memref<98xf32, #tpu.memory_space<smem>>
    %111 = vector.broadcast %110 : f32 to vector<1x384xf32>
    %112 = arith.mulf %111, %81 : vector<1x384xf32>
    %113 = arith.addf %109, %112 : vector<1x384xf32>
    %c29 = arith.constant 29 : index
    %114 = memref.load %arg1[%c29] : memref<98xf32, #tpu.memory_space<smem>>
    %115 = vector.broadcast %114 : f32 to vector<1x384xf32>
    %116 = arith.mulf %115, %79 : vector<1x384xf32>
    %117 = arith.addf %60, %116 : vector<1x384xf32>
    %c78 = arith.constant 78 : index
    %118 = memref.load %arg1[%c78] : memref<98xf32, #tpu.memory_space<smem>>
    %119 = vector.broadcast %118 : f32 to vector<1x384xf32>
    %120 = arith.mulf %119, %81 : vector<1x384xf32>
    %121 = arith.addf %117, %120 : vector<1x384xf32>
    %c36 = arith.constant 36 : index
    %122 = memref.load %arg1[%c36] : memref<98xf32, #tpu.memory_space<smem>>
    %123 = vector.broadcast %122 : f32 to vector<1x384xf32>
    %124 = arith.mulf %123, %79 : vector<1x384xf32>
    %125 = arith.addf %68, %124 : vector<1x384xf32>
    %c85 = arith.constant 85 : index
    %126 = memref.load %arg1[%c85] : memref<98xf32, #tpu.memory_space<smem>>
    %127 = vector.broadcast %126 : f32 to vector<1x384xf32>
    %128 = arith.mulf %127, %81 : vector<1x384xf32>
    %129 = arith.addf %125, %128 : vector<1x384xf32>
    %c43 = arith.constant 43 : index
    %130 = memref.load %arg1[%c43] : memref<98xf32, #tpu.memory_space<smem>>
    %131 = vector.broadcast %130 : f32 to vector<1x384xf32>
    %132 = arith.mulf %131, %79 : vector<1x384xf32>
    %133 = arith.addf %76, %132 : vector<1x384xf32>
    %c92 = arith.constant 92 : index
    %134 = memref.load %arg1[%c92] : memref<98xf32, #tpu.memory_space<smem>>
    %135 = vector.broadcast %134 : f32 to vector<1x384xf32>
    %136 = arith.mulf %135, %81 : vector<1x384xf32>
    %137 = arith.addf %133, %136 : vector<1x384xf32>
    %c2 = arith.constant 2 : index
    %c0_32 = arith.constant 0 : index
    %138 = vector.load %arg2[%c2, %c0_32] : memref<7x384xf32, #tpu.memory_space<vmem>>, vector<1x384xf32>
    %c0_33 = arith.constant 0 : index
    %c2_34 = arith.constant 2 : index
    %139 = vector.load %arg5[%c0_33, %c2_34] : memref<1x390xf32, #tpu.memory_space<vmem>>, vector<1x384xf32>
    %140 = arith.mulf %139, %138 : vector<1x384xf32>
    %c0_35 = arith.constant 0 : index
    %c2_36 = arith.constant 2 : index
    %141 = vector.load %arg6[%c0_35, %c2_36] : memref<1x390xf32, #tpu.memory_space<vmem>>, vector<1x384xf32>
    %142 = arith.mulf %141, %138 : vector<1x384xf32>
    %c2_37 = arith.constant 2 : index
    %143 = memref.load %arg1[%c2_37] : memref<98xf32, #tpu.memory_space<smem>>
    %144 = vector.broadcast %143 : f32 to vector<1x384xf32>
    %145 = arith.mulf %144, %140 : vector<1x384xf32>
    %146 = arith.addf %89, %145 : vector<1x384xf32>
    %c51_38 = arith.constant 51 : index
    %147 = memref.load %arg1[%c51_38] : memref<98xf32, #tpu.memory_space<smem>>
    %148 = vector.broadcast %147 : f32 to vector<1x384xf32>
    %149 = arith.mulf %148, %142 : vector<1x384xf32>
    %150 = arith.addf %146, %149 : vector<1x384xf32>
    %c9 = arith.constant 9 : index
    %151 = memref.load %arg1[%c9] : memref<98xf32, #tpu.memory_space<smem>>
    %152 = vector.broadcast %151 : f32 to vector<1x384xf32>
    %153 = arith.mulf %152, %140 : vector<1x384xf32>
    %154 = arith.addf %97, %153 : vector<1x384xf32>
    %c58 = arith.constant 58 : index
    %155 = memref.load %arg1[%c58] : memref<98xf32, #tpu.memory_space<smem>>
    %156 = vector.broadcast %155 : f32 to vector<1x384xf32>
    %157 = arith.mulf %156, %142 : vector<1x384xf32>
    %158 = arith.addf %154, %157 : vector<1x384xf32>
    %c16 = arith.constant 16 : index
    %159 = memref.load %arg1[%c16] : memref<98xf32, #tpu.memory_space<smem>>
    %160 = vector.broadcast %159 : f32 to vector<1x384xf32>
    %161 = arith.mulf %160, %140 : vector<1x384xf32>
    %162 = arith.addf %105, %161 : vector<1x384xf32>
    %c65 = arith.constant 65 : index
    %163 = memref.load %arg1[%c65] : memref<98xf32, #tpu.memory_space<smem>>
    %164 = vector.broadcast %163 : f32 to vector<1x384xf32>
    %165 = arith.mulf %164, %142 : vector<1x384xf32>
    %166 = arith.addf %162, %165 : vector<1x384xf32>
    %c23 = arith.constant 23 : index
    %167 = memref.load %arg1[%c23] : memref<98xf32, #tpu.memory_space<smem>>
    %168 = vector.broadcast %167 : f32 to vector<1x384xf32>
    %169 = arith.mulf %168, %140 : vector<1x384xf32>
    %170 = arith.addf %113, %169 : vector<1x384xf32>
    %c72 = arith.constant 72 : index
    %171 = memref.load %arg1[%c72] : memref<98xf32, #tpu.memory_space<smem>>
    %172 = vector.broadcast %171 : f32 to vector<1x384xf32>
    %173 = arith.mulf %172, %142 : vector<1x384xf32>
    %174 = arith.addf %170, %173 : vector<1x384xf32>
    %c30 = arith.constant 30 : index
    %175 = memref.load %arg1[%c30] : memref<98xf32, #tpu.memory_space<smem>>
    %176 = vector.broadcast %175 : f32 to vector<1x384xf32>
    %177 = arith.mulf %176, %140 : vector<1x384xf32>
    %178 = arith.addf %121, %177 : vector<1x384xf32>
    %c79 = arith.constant 79 : index
    %179 = memref.load %arg1[%c79] : memref<98xf32, #tpu.memory_space<smem>>
    %180 = vector.broadcast %179 : f32 to vector<1x384xf32>
    %181 = arith.mulf %180, %142 : vector<1x384xf32>
    %182 = arith.addf %178, %181 : vector<1x384xf32>
    %c37 = arith.constant 37 : index
    %183 = memref.load %arg1[%c37] : memref<98xf32, #tpu.memory_space<smem>>
    %184 = vector.broadcast %183 : f32 to vector<1x384xf32>
    %185 = arith.mulf %184, %140 : vector<1x384xf32>
    %186 = arith.addf %129, %185 : vector<1x384xf32>
    %c86 = arith.constant 86 : index
    %187 = memref.load %arg1[%c86] : memref<98xf32, #tpu.memory_space<smem>>
    %188 = vector.broadcast %187 : f32 to vector<1x384xf32>
    %189 = arith.mulf %188, %142 : vector<1x384xf32>
    %190 = arith.addf %186, %189 : vector<1x384xf32>
    %c44 = arith.constant 44 : index
    %191 = memref.load %arg1[%c44] : memref<98xf32, #tpu.memory_space<smem>>
    %192 = vector.broadcast %191 : f32 to vector<1x384xf32>
    %193 = arith.mulf %192, %140 : vector<1x384xf32>
    %194 = arith.addf %137, %193 : vector<1x384xf32>
    %c93 = arith.constant 93 : index
    %195 = memref.load %arg1[%c93] : memref<98xf32, #tpu.memory_space<smem>>
    %196 = vector.broadcast %195 : f32 to vector<1x384xf32>
    %197 = arith.mulf %196, %142 : vector<1x384xf32>
    %198 = arith.addf %194, %197 : vector<1x384xf32>
    %c3 = arith.constant 3 : index
    %c0_39 = arith.constant 0 : index
    %199 = vector.load %arg2[%c3, %c0_39] : memref<7x384xf32, #tpu.memory_space<vmem>>, vector<1x384xf32>
    %c0_40 = arith.constant 0 : index
    %c3_41 = arith.constant 3 : index
    %200 = vector.load %arg5[%c0_40, %c3_41] : memref<1x390xf32, #tpu.memory_space<vmem>>, vector<1x384xf32>
    %201 = arith.mulf %200, %199 : vector<1x384xf32>
    %c0_42 = arith.constant 0 : index
    %c3_43 = arith.constant 3 : index
    %202 = vector.load %arg6[%c0_42, %c3_43] : memref<1x390xf32, #tpu.memory_space<vmem>>, vector<1x384xf32>
    %203 = arith.mulf %202, %199 : vector<1x384xf32>
    %c3_44 = arith.constant 3 : index
    %204 = memref.load %arg1[%c3_44] : memref<98xf32, #tpu.memory_space<smem>>
    %205 = vector.broadcast %204 : f32 to vector<1x384xf32>
    %206 = arith.mulf %205, %201 : vector<1x384xf32>
    %207 = arith.addf %150, %206 : vector<1x384xf32>
    %c52 = arith.constant 52 : index
    %208 = memref.load %arg1[%c52] : memref<98xf32, #tpu.memory_space<smem>>
    %209 = vector.broadcast %208 : f32 to vector<1x384xf32>
    %210 = arith.mulf %209, %203 : vector<1x384xf32>
    %211 = arith.addf %207, %210 : vector<1x384xf32>
    %c10 = arith.constant 10 : index
    %212 = memref.load %arg1[%c10] : memref<98xf32, #tpu.memory_space<smem>>
    %213 = vector.broadcast %212 : f32 to vector<1x384xf32>
    %214 = arith.mulf %213, %201 : vector<1x384xf32>
    %215 = arith.addf %158, %214 : vector<1x384xf32>
    %c59 = arith.constant 59 : index
    %216 = memref.load %arg1[%c59] : memref<98xf32, #tpu.memory_space<smem>>
    %217 = vector.broadcast %216 : f32 to vector<1x384xf32>
    %218 = arith.mulf %217, %203 : vector<1x384xf32>
    %219 = arith.addf %215, %218 : vector<1x384xf32>
    %c17 = arith.constant 17 : index
    %220 = memref.load %arg1[%c17] : memref<98xf32, #tpu.memory_space<smem>>
    %221 = vector.broadcast %220 : f32 to vector<1x384xf32>
    %222 = arith.mulf %221, %201 : vector<1x384xf32>
    %223 = arith.addf %166, %222 : vector<1x384xf32>
    %c66 = arith.constant 66 : index
    %224 = memref.load %arg1[%c66] : memref<98xf32, #tpu.memory_space<smem>>
    %225 = vector.broadcast %224 : f32 to vector<1x384xf32>
    %226 = arith.mulf %225, %203 : vector<1x384xf32>
    %227 = arith.addf %223, %226 : vector<1x384xf32>
    %c24 = arith.constant 24 : index
    %228 = memref.load %arg1[%c24] : memref<98xf32, #tpu.memory_space<smem>>
    %229 = vector.broadcast %228 : f32 to vector<1x384xf32>
    %230 = arith.mulf %229, %201 : vector<1x384xf32>
    %231 = arith.addf %174, %230 : vector<1x384xf32>
    %c73 = arith.constant 73 : index
    %232 = memref.load %arg1[%c73] : memref<98xf32, #tpu.memory_space<smem>>
    %233 = vector.broadcast %232 : f32 to vector<1x384xf32>
    %234 = arith.mulf %233, %203 : vector<1x384xf32>
    %235 = arith.addf %231, %234 : vector<1x384xf32>
    %c31 = arith.constant 31 : index
    %236 = memref.load %arg1[%c31] : memref<98xf32, #tpu.memory_space<smem>>
    %237 = vector.broadcast %236 : f32 to vector<1x384xf32>
    %238 = arith.mulf %237, %201 : vector<1x384xf32>
    %239 = arith.addf %182, %238 : vector<1x384xf32>
    %c80 = arith.constant 80 : index
    %240 = memref.load %arg1[%c80] : memref<98xf32, #tpu.memory_space<smem>>
    %241 = vector.broadcast %240 : f32 to vector<1x384xf32>
    %242 = arith.mulf %241, %203 : vector<1x384xf32>
    %243 = arith.addf %239, %242 : vector<1x384xf32>
    %c38 = arith.constant 38 : index
    %244 = memref.load %arg1[%c38] : memref<98xf32, #tpu.memory_space<smem>>
    %245 = vector.broadcast %244 : f32 to vector<1x384xf32>
    %246 = arith.mulf %245, %201 : vector<1x384xf32>
    %247 = arith.addf %190, %246 : vector<1x384xf32>
    %c87 = arith.constant 87 : index
    %248 = memref.load %arg1[%c87] : memref<98xf32, #tpu.memory_space<smem>>
    %249 = vector.broadcast %248 : f32 to vector<1x384xf32>
    %250 = arith.mulf %249, %203 : vector<1x384xf32>
    %251 = arith.addf %247, %250 : vector<1x384xf32>
    %c45 = arith.constant 45 : index
    %252 = memref.load %arg1[%c45] : memref<98xf32, #tpu.memory_space<smem>>
    %253 = vector.broadcast %252 : f32 to vector<1x384xf32>
    %254 = arith.mulf %253, %201 : vector<1x384xf32>
    %255 = arith.addf %198, %254 : vector<1x384xf32>
    %c94 = arith.constant 94 : index
    %256 = memref.load %arg1[%c94] : memref<98xf32, #tpu.memory_space<smem>>
    %257 = vector.broadcast %256 : f32 to vector<1x384xf32>
    %258 = arith.mulf %257, %203 : vector<1x384xf32>
    %259 = arith.addf %255, %258 : vector<1x384xf32>
    %c4 = arith.constant 4 : index
    %c0_45 = arith.constant 0 : index
    %260 = vector.load %arg2[%c4, %c0_45] : memref<7x384xf32, #tpu.memory_space<vmem>>, vector<1x384xf32>
    %c0_46 = arith.constant 0 : index
    %c4_47 = arith.constant 4 : index
    %261 = vector.load %arg5[%c0_46, %c4_47] : memref<1x390xf32, #tpu.memory_space<vmem>>, vector<1x384xf32>
    %262 = arith.mulf %261, %260 : vector<1x384xf32>
    %c0_48 = arith.constant 0 : index
    %c4_49 = arith.constant 4 : index
    %263 = vector.load %arg6[%c0_48, %c4_49] : memref<1x390xf32, #tpu.memory_space<vmem>>, vector<1x384xf32>
    %264 = arith.mulf %263, %260 : vector<1x384xf32>
    %c4_50 = arith.constant 4 : index
    %265 = memref.load %arg1[%c4_50] : memref<98xf32, #tpu.memory_space<smem>>
    %266 = vector.broadcast %265 : f32 to vector<1x384xf32>
    %267 = arith.mulf %266, %262 : vector<1x384xf32>
    %268 = arith.addf %211, %267 : vector<1x384xf32>
    %c53 = arith.constant 53 : index
    %269 = memref.load %arg1[%c53] : memref<98xf32, #tpu.memory_space<smem>>
    %270 = vector.broadcast %269 : f32 to vector<1x384xf32>
    %271 = arith.mulf %270, %264 : vector<1x384xf32>
    %272 = arith.addf %268, %271 : vector<1x384xf32>
    %c11 = arith.constant 11 : index
    %273 = memref.load %arg1[%c11] : memref<98xf32, #tpu.memory_space<smem>>
    %274 = vector.broadcast %273 : f32 to vector<1x384xf32>
    %275 = arith.mulf %274, %262 : vector<1x384xf32>
    %276 = arith.addf %219, %275 : vector<1x384xf32>
    %c60 = arith.constant 60 : index
    %277 = memref.load %arg1[%c60] : memref<98xf32, #tpu.memory_space<smem>>
    %278 = vector.broadcast %277 : f32 to vector<1x384xf32>
    %279 = arith.mulf %278, %264 : vector<1x384xf32>
    %280 = arith.addf %276, %279 : vector<1x384xf32>
    %c18 = arith.constant 18 : index
    %281 = memref.load %arg1[%c18] : memref<98xf32, #tpu.memory_space<smem>>
    %282 = vector.broadcast %281 : f32 to vector<1x384xf32>
    %283 = arith.mulf %282, %262 : vector<1x384xf32>
    %284 = arith.addf %227, %283 : vector<1x384xf32>
    %c67 = arith.constant 67 : index
    %285 = memref.load %arg1[%c67] : memref<98xf32, #tpu.memory_space<smem>>
    %286 = vector.broadcast %285 : f32 to vector<1x384xf32>
    %287 = arith.mulf %286, %264 : vector<1x384xf32>
    %288 = arith.addf %284, %287 : vector<1x384xf32>
    %c25 = arith.constant 25 : index
    %289 = memref.load %arg1[%c25] : memref<98xf32, #tpu.memory_space<smem>>
    %290 = vector.broadcast %289 : f32 to vector<1x384xf32>
    %291 = arith.mulf %290, %262 : vector<1x384xf32>
    %292 = arith.addf %235, %291 : vector<1x384xf32>
    %c74 = arith.constant 74 : index
    %293 = memref.load %arg1[%c74] : memref<98xf32, #tpu.memory_space<smem>>
    %294 = vector.broadcast %293 : f32 to vector<1x384xf32>
    %295 = arith.mulf %294, %264 : vector<1x384xf32>
    %296 = arith.addf %292, %295 : vector<1x384xf32>
    %c32 = arith.constant 32 : index
    %297 = memref.load %arg1[%c32] : memref<98xf32, #tpu.memory_space<smem>>
    %298 = vector.broadcast %297 : f32 to vector<1x384xf32>
    %299 = arith.mulf %298, %262 : vector<1x384xf32>
    %300 = arith.addf %243, %299 : vector<1x384xf32>
    %c81 = arith.constant 81 : index
    %301 = memref.load %arg1[%c81] : memref<98xf32, #tpu.memory_space<smem>>
    %302 = vector.broadcast %301 : f32 to vector<1x384xf32>
    %303 = arith.mulf %302, %264 : vector<1x384xf32>
    %304 = arith.addf %300, %303 : vector<1x384xf32>
    %c39 = arith.constant 39 : index
    %305 = memref.load %arg1[%c39] : memref<98xf32, #tpu.memory_space<smem>>
    %306 = vector.broadcast %305 : f32 to vector<1x384xf32>
    %307 = arith.mulf %306, %262 : vector<1x384xf32>
    %308 = arith.addf %251, %307 : vector<1x384xf32>
    %c88 = arith.constant 88 : index
    %309 = memref.load %arg1[%c88] : memref<98xf32, #tpu.memory_space<smem>>
    %310 = vector.broadcast %309 : f32 to vector<1x384xf32>
    %311 = arith.mulf %310, %264 : vector<1x384xf32>
    %312 = arith.addf %308, %311 : vector<1x384xf32>
    %c46 = arith.constant 46 : index
    %313 = memref.load %arg1[%c46] : memref<98xf32, #tpu.memory_space<smem>>
    %314 = vector.broadcast %313 : f32 to vector<1x384xf32>
    %315 = arith.mulf %314, %262 : vector<1x384xf32>
    %316 = arith.addf %259, %315 : vector<1x384xf32>
    %c95 = arith.constant 95 : index
    %317 = memref.load %arg1[%c95] : memref<98xf32, #tpu.memory_space<smem>>
    %318 = vector.broadcast %317 : f32 to vector<1x384xf32>
    %319 = arith.mulf %318, %264 : vector<1x384xf32>
    %320 = arith.addf %316, %319 : vector<1x384xf32>
    %c5 = arith.constant 5 : index
    %c0_51 = arith.constant 0 : index
    %321 = vector.load %arg2[%c5, %c0_51] : memref<7x384xf32, #tpu.memory_space<vmem>>, vector<1x384xf32>
    %c0_52 = arith.constant 0 : index
    %c5_53 = arith.constant 5 : index
    %322 = vector.load %arg5[%c0_52, %c5_53] : memref<1x390xf32, #tpu.memory_space<vmem>>, vector<1x384xf32>
    %323 = arith.mulf %322, %321 : vector<1x384xf32>
    %c0_54 = arith.constant 0 : index
    %c5_55 = arith.constant 5 : index
    %324 = vector.load %arg6[%c0_54, %c5_55] : memref<1x390xf32, #tpu.memory_space<vmem>>, vector<1x384xf32>
    %325 = arith.mulf %324, %321 : vector<1x384xf32>
    %c5_56 = arith.constant 5 : index
    %326 = memref.load %arg1[%c5_56] : memref<98xf32, #tpu.memory_space<smem>>
    %327 = vector.broadcast %326 : f32 to vector<1x384xf32>
    %328 = arith.mulf %327, %323 : vector<1x384xf32>
    %329 = arith.addf %272, %328 : vector<1x384xf32>
    %c54 = arith.constant 54 : index
    %330 = memref.load %arg1[%c54] : memref<98xf32, #tpu.memory_space<smem>>
    %331 = vector.broadcast %330 : f32 to vector<1x384xf32>
    %332 = arith.mulf %331, %325 : vector<1x384xf32>
    %333 = arith.addf %329, %332 : vector<1x384xf32>
    %c12 = arith.constant 12 : index
    %334 = memref.load %arg1[%c12] : memref<98xf32, #tpu.memory_space<smem>>
    %335 = vector.broadcast %334 : f32 to vector<1x384xf32>
    %336 = arith.mulf %335, %323 : vector<1x384xf32>
    %337 = arith.addf %280, %336 : vector<1x384xf32>
    %c61 = arith.constant 61 : index
    %338 = memref.load %arg1[%c61] : memref<98xf32, #tpu.memory_space<smem>>
    %339 = vector.broadcast %338 : f32 to vector<1x384xf32>
    %340 = arith.mulf %339, %325 : vector<1x384xf32>
    %341 = arith.addf %337, %340 : vector<1x384xf32>
    %c19 = arith.constant 19 : index
    %342 = memref.load %arg1[%c19] : memref<98xf32, #tpu.memory_space<smem>>
    %343 = vector.broadcast %342 : f32 to vector<1x384xf32>
    %344 = arith.mulf %343, %323 : vector<1x384xf32>
    %345 = arith.addf %288, %344 : vector<1x384xf32>
    %c68 = arith.constant 68 : index
    %346 = memref.load %arg1[%c68] : memref<98xf32, #tpu.memory_space<smem>>
    %347 = vector.broadcast %346 : f32 to vector<1x384xf32>
    %348 = arith.mulf %347, %325 : vector<1x384xf32>
    %349 = arith.addf %345, %348 : vector<1x384xf32>
    %c26 = arith.constant 26 : index
    %350 = memref.load %arg1[%c26] : memref<98xf32, #tpu.memory_space<smem>>
    %351 = vector.broadcast %350 : f32 to vector<1x384xf32>
    %352 = arith.mulf %351, %323 : vector<1x384xf32>
    %353 = arith.addf %296, %352 : vector<1x384xf32>
    %c75 = arith.constant 75 : index
    %354 = memref.load %arg1[%c75] : memref<98xf32, #tpu.memory_space<smem>>
    %355 = vector.broadcast %354 : f32 to vector<1x384xf32>
    %356 = arith.mulf %355, %325 : vector<1x384xf32>
    %357 = arith.addf %353, %356 : vector<1x384xf32>
    %c33 = arith.constant 33 : index
    %358 = memref.load %arg1[%c33] : memref<98xf32, #tpu.memory_space<smem>>
    %359 = vector.broadcast %358 : f32 to vector<1x384xf32>
    %360 = arith.mulf %359, %323 : vector<1x384xf32>
    %361 = arith.addf %304, %360 : vector<1x384xf32>
    %c82 = arith.constant 82 : index
    %362 = memref.load %arg1[%c82] : memref<98xf32, #tpu.memory_space<smem>>
    %363 = vector.broadcast %362 : f32 to vector<1x384xf32>
    %364 = arith.mulf %363, %325 : vector<1x384xf32>
    %365 = arith.addf %361, %364 : vector<1x384xf32>
    %c40 = arith.constant 40 : index
    %366 = memref.load %arg1[%c40] : memref<98xf32, #tpu.memory_space<smem>>
    %367 = vector.broadcast %366 : f32 to vector<1x384xf32>
    %368 = arith.mulf %367, %323 : vector<1x384xf32>
    %369 = arith.addf %312, %368 : vector<1x384xf32>
    %c89 = arith.constant 89 : index
    %370 = memref.load %arg1[%c89] : memref<98xf32, #tpu.memory_space<smem>>
    %371 = vector.broadcast %370 : f32 to vector<1x384xf32>
    %372 = arith.mulf %371, %325 : vector<1x384xf32>
    %373 = arith.addf %369, %372 : vector<1x384xf32>
    %c47 = arith.constant 47 : index
    %374 = memref.load %arg1[%c47] : memref<98xf32, #tpu.memory_space<smem>>
    %375 = vector.broadcast %374 : f32 to vector<1x384xf32>
    %376 = arith.mulf %375, %323 : vector<1x384xf32>
    %377 = arith.addf %320, %376 : vector<1x384xf32>
    %c96 = arith.constant 96 : index
    %378 = memref.load %arg1[%c96] : memref<98xf32, #tpu.memory_space<smem>>
    %379 = vector.broadcast %378 : f32 to vector<1x384xf32>
    %380 = arith.mulf %379, %325 : vector<1x384xf32>
    %381 = arith.addf %377, %380 : vector<1x384xf32>
    %c6 = arith.constant 6 : index
    %c0_57 = arith.constant 0 : index
    %382 = vector.load %arg2[%c6, %c0_57] : memref<7x384xf32, #tpu.memory_space<vmem>>, vector<1x384xf32>
    %c0_58 = arith.constant 0 : index
    %c6_59 = arith.constant 6 : index
    %383 = vector.load %arg5[%c0_58, %c6_59] : memref<1x390xf32, #tpu.memory_space<vmem>>, vector<1x384xf32>
    %384 = arith.mulf %383, %382 : vector<1x384xf32>
    %c0_60 = arith.constant 0 : index
    %c6_61 = arith.constant 6 : index
    %385 = vector.load %arg6[%c0_60, %c6_61] : memref<1x390xf32, #tpu.memory_space<vmem>>, vector<1x384xf32>
    %386 = arith.mulf %385, %382 : vector<1x384xf32>
    %c6_62 = arith.constant 6 : index
    %387 = memref.load %arg1[%c6_62] : memref<98xf32, #tpu.memory_space<smem>>
    %388 = vector.broadcast %387 : f32 to vector<1x384xf32>
    %389 = arith.mulf %388, %384 : vector<1x384xf32>
    %390 = arith.addf %333, %389 : vector<1x384xf32>
    %c55 = arith.constant 55 : index
    %391 = memref.load %arg1[%c55] : memref<98xf32, #tpu.memory_space<smem>>
    %392 = vector.broadcast %391 : f32 to vector<1x384xf32>
    %393 = arith.mulf %392, %386 : vector<1x384xf32>
    %394 = arith.addf %390, %393 : vector<1x384xf32>
    %c13 = arith.constant 13 : index
    %395 = memref.load %arg1[%c13] : memref<98xf32, #tpu.memory_space<smem>>
    %396 = vector.broadcast %395 : f32 to vector<1x384xf32>
    %397 = arith.mulf %396, %384 : vector<1x384xf32>
    %398 = arith.addf %341, %397 : vector<1x384xf32>
    %c62 = arith.constant 62 : index
    %399 = memref.load %arg1[%c62] : memref<98xf32, #tpu.memory_space<smem>>
    %400 = vector.broadcast %399 : f32 to vector<1x384xf32>
    %401 = arith.mulf %400, %386 : vector<1x384xf32>
    %402 = arith.addf %398, %401 : vector<1x384xf32>
    %c20 = arith.constant 20 : index
    %403 = memref.load %arg1[%c20] : memref<98xf32, #tpu.memory_space<smem>>
    %404 = vector.broadcast %403 : f32 to vector<1x384xf32>
    %405 = arith.mulf %404, %384 : vector<1x384xf32>
    %406 = arith.addf %349, %405 : vector<1x384xf32>
    %c69 = arith.constant 69 : index
    %407 = memref.load %arg1[%c69] : memref<98xf32, #tpu.memory_space<smem>>
    %408 = vector.broadcast %407 : f32 to vector<1x384xf32>
    %409 = arith.mulf %408, %386 : vector<1x384xf32>
    %410 = arith.addf %406, %409 : vector<1x384xf32>
    %c27 = arith.constant 27 : index
    %411 = memref.load %arg1[%c27] : memref<98xf32, #tpu.memory_space<smem>>
    %412 = vector.broadcast %411 : f32 to vector<1x384xf32>
    %413 = arith.mulf %412, %384 : vector<1x384xf32>
    %414 = arith.addf %357, %413 : vector<1x384xf32>
    %c76 = arith.constant 76 : index
    %415 = memref.load %arg1[%c76] : memref<98xf32, #tpu.memory_space<smem>>
    %416 = vector.broadcast %415 : f32 to vector<1x384xf32>
    %417 = arith.mulf %416, %386 : vector<1x384xf32>
    %418 = arith.addf %414, %417 : vector<1x384xf32>
    %c34 = arith.constant 34 : index
    %419 = memref.load %arg1[%c34] : memref<98xf32, #tpu.memory_space<smem>>
    %420 = vector.broadcast %419 : f32 to vector<1x384xf32>
    %421 = arith.mulf %420, %384 : vector<1x384xf32>
    %422 = arith.addf %365, %421 : vector<1x384xf32>
    %c83 = arith.constant 83 : index
    %423 = memref.load %arg1[%c83] : memref<98xf32, #tpu.memory_space<smem>>
    %424 = vector.broadcast %423 : f32 to vector<1x384xf32>
    %425 = arith.mulf %424, %386 : vector<1x384xf32>
    %426 = arith.addf %422, %425 : vector<1x384xf32>
    %c41 = arith.constant 41 : index
    %427 = memref.load %arg1[%c41] : memref<98xf32, #tpu.memory_space<smem>>
    %428 = vector.broadcast %427 : f32 to vector<1x384xf32>
    %429 = arith.mulf %428, %384 : vector<1x384xf32>
    %430 = arith.addf %373, %429 : vector<1x384xf32>
    %c90 = arith.constant 90 : index
    %431 = memref.load %arg1[%c90] : memref<98xf32, #tpu.memory_space<smem>>
    %432 = vector.broadcast %431 : f32 to vector<1x384xf32>
    %433 = arith.mulf %432, %386 : vector<1x384xf32>
    %434 = arith.addf %430, %433 : vector<1x384xf32>
    %c48 = arith.constant 48 : index
    %435 = memref.load %arg1[%c48] : memref<98xf32, #tpu.memory_space<smem>>
    %436 = vector.broadcast %435 : f32 to vector<1x384xf32>
    %437 = arith.mulf %436, %384 : vector<1x384xf32>
    %438 = arith.addf %381, %437 : vector<1x384xf32>
    %c97 = arith.constant 97 : index
    %439 = memref.load %arg1[%c97] : memref<98xf32, #tpu.memory_space<smem>>
    %440 = vector.broadcast %439 : f32 to vector<1x384xf32>
    %441 = arith.mulf %440, %386 : vector<1x384xf32>
    %442 = arith.addf %438, %441 : vector<1x384xf32>
    %cst_63 = arith.constant 0.000000e+00 : f32
    %443 = vector.broadcast %cst_63 : f32 to vector<1x256xf32>
    %444 = vector.extract_strided_slice %394 {offsets = [0, 0], sizes = [1, 256], strides = [1, 1]} : vector<1x384xf32> to vector<1x256xf32>
    %445 = arith.addf %443, %444 : vector<1x256xf32>
    %446 = vector.extract_strided_slice %402 {offsets = [0, 16], sizes = [1, 256], strides = [1, 1]} : vector<1x384xf32> to vector<1x256xf32>
    %447 = arith.addf %445, %446 : vector<1x256xf32>
    %448 = vector.extract_strided_slice %410 {offsets = [0, 32], sizes = [1, 256], strides = [1, 1]} : vector<1x384xf32> to vector<1x256xf32>
    %449 = arith.addf %447, %448 : vector<1x256xf32>
    %450 = vector.extract_strided_slice %418 {offsets = [0, 48], sizes = [1, 256], strides = [1, 1]} : vector<1x384xf32> to vector<1x256xf32>
    %451 = arith.addf %449, %450 : vector<1x256xf32>
    %452 = vector.extract_strided_slice %426 {offsets = [0, 64], sizes = [1, 256], strides = [1, 1]} : vector<1x384xf32> to vector<1x256xf32>
    %453 = arith.addf %451, %452 : vector<1x256xf32>
    %454 = vector.extract_strided_slice %434 {offsets = [0, 80], sizes = [1, 256], strides = [1, 1]} : vector<1x384xf32> to vector<1x256xf32>
    %455 = arith.addf %453, %454 : vector<1x256xf32>
    %456 = vector.extract_strided_slice %442 {offsets = [0, 96], sizes = [1, 256], strides = [1, 1]} : vector<1x384xf32> to vector<1x256xf32>
    %457 = arith.addf %455, %456 : vector<1x256xf32>
    %458 = arith.negf %457 : vector<1x256xf32>
    %459 = math.exp %458 : vector<1x256xf32>
    %cst_64 = arith.constant 1.000000e+00 : f32
    %460 = vector.broadcast %cst_64 : f32 to vector<1x256xf32>
    %461 = arith.addf %460, %459 : vector<1x256xf32>
    %462 = arith.divf %460, %461 : vector<1x256xf32>
    %463 = vector.shape_cast %462 : vector<1x256xf32> to vector<1x1x256xf32>
    %464 = vector.broadcast %463 : vector<1x1x256xf32> to vector<1x4x256xf32>
    %465 = arith.mulf %0, %464 : vector<1x4x256xf32>
    %c0_65 = arith.constant 0 : index
    %c0_66 = arith.constant 0 : index
    %c0_67 = arith.constant 0 : index
    %466 = vector.load %arg4[%c0_65, %c0_66, %c0_67] : memref<1x4x256xf32, #tpu.memory_space<vmem>>, vector<1x4x256xf32>
    tpu.vector_store %arg4[%c0_65, %c0_66, %c0_67], %465 {strides = array<i32>} : memref<1x4x256xf32, #tpu.memory_space<vmem>>, vector<1x4x256xf32>,
    return
  }
  func.func @transform_0(%arg0: i32) -> i32 {
    %c0_i32 = arith.constant 0 : i32
    %c0_i32_0 = arith.constant 0 : i32
    return %c0_i32 : i32
  }
  func.func @transform_1(%arg0: i32) -> (i32, i32) {
    %c0_i32 = arith.constant 0 : i32
    %c0_i32_0 = arith.constant 0 : i32
    %c0_i32_1 = arith.constant 0 : i32
    return %c0_i32, %c0_i32_0 : i32, i32
  }
  func.func @transform_2(%arg0: i32) -> (i32, i32, i32) {
    %c0_i32 = arith.constant 0 : i32
    %c0_i32_0 = arith.constant 0 : i32
    %c0_i32_1 = arith.constant 0 : i32
    return %arg0, %c0_i32, %c0_i32_0 : i32, i32, i32
  }
  func.func @transform_3(%arg0: i32) -> (i32, i32, i32) {
    %c0_i32 = arith.constant 0 : i32
    %c0_i32_0 = arith.constant 0 : i32
    %c0_i32_1 = arith.constant 0 : i32
    return %arg0, %c0_i32, %c0_i32_0 : i32, i32, i32
  }
}

</mosaic_0001>

<llo_original>
// kernel: tpu_custom_call.1
$region0: #{tpu_custom_call.1}
  #allocation0 [shape = 'u32[]', space=smem, size = 0x4, offset = 0x4, fixed_abs, tag = 'smem constant byte address 0x4 - core index']
  #allocation1 [shape = 'u32[72,128]{1,0:T(1,128)}', space=vmem, size = 0x9000, scoped, tag = 'internal scratch']
  #allocation2 [shape = 'f32[1,390]{1,0:T(1,128)}', space=vmem, size = 0x800, scoped, tag = 'scratch operand']
  #allocation3 [shape = 'f32[1,390]{1,0:T(1,128)}', space=vmem, size = 0x800, scoped, tag = 'scratch operand']
  %s0 = inlined_call_operand.hbm [shape: f32[98], index: 0, kind: input, shape index: {}]
  %s1 = inlined_call_operand.hbm [shape: f32[7,384], index: 1, kind: input, shape index: {}]
  %s2 = inlined_call_operand.hbm [shape: f32[2,4,256], index: 2, kind: input, shape index: {}]
  %s3 = inlined_call_operand.hbm [shape: f32[2,4,256], index: 3, kind: output, shape index: {}]
  %s4 = sld [smem:[#allocation0]]
  $region57: #{tpu_custom_call.1} parent=0
    _
  %s6 = ssub.s32 1, %s4
  %s7 = scalar_select 0, %s6, %s4
  $region1: #{tpu_custom_call.1} parent=0
    #allocation4 [shape = 'u8[512]{0}', space=smem, size = 0x200, scoped, tag = 'input window, operand 0, single buffered']
    #allocation5 [shape = 's32[2]{0}', space=sflag, size = 0x8, scoped, tag = 'scoped memory for tpu_custom_call.1']
    #allocation6 [shape = 's32[2]{0}', space=sflag, size = 0x8, scoped, tag = 'scoped memory for tpu_custom_call.1']
    #allocation7 [shape = 's32[2]{0}', space=sflag, size = 0x8, scoped, tag = 'scoped memory for tpu_custom_call.1']
    #allocation8 [shape = 'u8[12288]{0}', space=vmem, size = 0x3000, scoped, tag = 'input window, operand 1, single buffered']
    #allocation9 [shape = 'u8[8192]{0}', space=vmem, size = 0x2000, scoped, tag = 'input window, operand 2']
    #allocation10 [shape = 's32[2]{0}', space=sflag, size = 0x8, scoped, tag = 'scoped memory for tpu_custom_call.1']
    #allocation11 [shape = 'u8[8192]{0}', space=vmem, size = 0x2000, scoped, tag = 'output window, operand 0']
    %8 = vsyncpa [#allocation7], 0
    %9 = vsyncpa [#allocation5], 0
    %10 = vsyncpa [#allocation10], 0
    %s11 = scalar_lea.sflag [#allocation10], 1
    %12 = vsyncpa %s11, 0
    %13 = vsyncpa [#allocation6], 0
    %s14 = scalar_lea.sflag [#allocation6], 1
    %15 = vsyncpa %s14, 0
    loop: start=0, step=1, limit=4
    $region2: #{tpu_custom_call.1} parent=1 // loop_pre_header
      _
    $region3: #{tpu_custom_call.1} parent=1 // loop_header
      %s17 = sphi 0, %s21
      %p18 = scmp.ge.s32.totalorder %s17, 4
      %s25 = sphi 0, %s25
      %s27 = sphi 0, %s25
      %s28 = sphi 0, %s27
      %s42 = sphi 0, %s28
      %s46 = sphi 0, %s46
      %s48 = sphi 0, %s46
      %s49 = sphi 0, %s48
      %s63 = sphi 0, %s49
      %s69 = sphi 0, %s71
      %s72 = sphi 0, %s69
      %s73 = sphi 0, %s72
      %s89 = sphi 0, %s73
      %s95 = sphi 0, %s97
      %s98 = sphi 0, %s95
      %s99 = sphi 0, %s98
      %s115 = sphi 0, %s99
    $region4: #{tpu_custom_call.1} parent=1 // loop_header_branch
      %20 = sbr.rel (%p18) target = $region8
    $region5: #{tpu_custom_call.1} parent=1 // loop_body
      %s22 = ssub.s32 %s17, 1
      %s23 = ssub.s32 %s17, 2
      %s24 = sadd.s32 %s17, 1
      %s26 = sadd.s32 %s25, 1
      %p29 = scmp.eq.s32.totalorder %s17, 1
      %p30 = scmp.ne.s32.totalorder %s25, %s27
      %p31 = scmp.eq.s32.totalorder %s17, 0
      %p32 = por %p30, %p31
      %p33 = scmp.ne.s32.totalorder %s25, %s27
      %p34 = scmp.eq.s32.totalorder %s22, 1
      %p35 = por %p33, %p34
      %p36 = scmp.ne.s32.totalorder %s27, %s28
      %p37 = scmp.eq.s32.totalorder %s22, 0
      %p38 = por %p36, %p37
      %p39 = scmp.ne.s32.totalorder %s27, %s28
      %p40 = scmp.eq.s32.totalorder %s23, 1
      %p41 = por %p39, %p40
      %p43 = scmp.ne.s32.totalorder %s28, %s42
      %p44 = scmp.eq.s32.totalorder %s23, 0
      %p45 = por %p43, %p44
      %s47 = sadd.s32 %s46, 1
      %p50 = scmp.eq.s32.totalorder %s17, 1
      %p51 = scmp.ne.s32.totalorder %s46, %s48
      %p52 = scmp.eq.s32.totalorder %s17, 0
      %p53 = por %p51, %p52
      %p54 = scmp.ne.s32.totalorder %s46, %s48
      %p55 = scmp.eq.s32.totalorder %s22, 1
      %p56 = por %p54, %p55
      %p57 = scmp.ne.s32.totalorder %s48, %s49
      %p58 = scmp.eq.s32.totalorder %s22, 0
      %p59 = por %p57, %p58
      %p60 = scmp.ne.s32.totalorder %s48, %s49
      %p61 = scmp.eq.s32.totalorder %s23, 1
      %p62 = por %p60, %p61
      %p64 = scmp.ne.s32.totalorder %s49, %s63
      %p65 = scmp.eq.s32.totalorder %s23, 0
      %p66 = por %p64, %p65
      %s67 = ssub.s32 %s17, %s24
      %p68 = scmp.eq.s32.totalorder %s67, 0
      %s70 = sadd.s32 %s69, 1
      %s71 = scalar_select %p68, %s69, %s70
      %p74 = pneg %p68
      %p75 = scmp.eq.s32.totalorder %s17, 1
      %p76 = por %p74, %p75
      %p77 = scmp.ne.s32.totalorder %s69, %s72
      %p78 = scmp.eq.s32.totalorder %s17, 0
      %p79 = por %p77, %p78
      %p80 = scmp.ne.s32.totalorder %s69, %s72
      %p81 = scmp.eq.s32.totalorder %s22, 1
      %p82 = por %p80, %p81
      %p83 = scmp.ne.s32.totalorder %s72, %s73
      %p84 = scmp.eq.s32.totalorder %s22, 0
      %p85 = por %p83, %p84
      %p86 = scmp.ne.s32.totalorder %s72, %s73
      %p87 = scmp.eq.s32.totalorder %s23, 1
      %p88 = por %p86, %p87
      %p90 = scmp.ne.s32.totalorder %s73, %s89
      %p91 = scmp.eq.s32.totalorder %s23, 0
      %p92 = por %p90, %p91
      %s93 = ssub.s32 %s17, %s24
      %p94 = scmp.eq.s32.totalorder %s93, 0
      %s96 = sadd.s32 %s95, 1
      %s97 = scalar_select %p94, %s95, %s96
      %p100 = pneg %p94
      %p101 = scmp.eq.s32.totalorder %s17, 1
      %p102 = por %p100, %p101
      %p103 = scmp.ne.s32.totalorder %s95, %s98
      %p104 = scmp.eq.s32.totalorder %s17, 0
      %p105 = por %p103, %p104
      %p106 = scmp.ne.s32.totalorder %s95, %s98
      %p107 = scmp.eq.s32.totalorder %s22, 1
      %p108 = por %p106, %p107
      %p109 = scmp.ne.s32.totalorder %s98, %s99
      %p110 = scmp.eq.s32.totalorder %s22, 0
      %p111 = por %p109, %p110
      %p112 = scmp.ne.s32.totalorder %s98, %s99
      %p113 = scmp.eq.s32.totalorder %s23, 1
      %p114 = por %p112, %p113
      %p116 = scmp.ne.s32.totalorder %s99, %s115
      %p117 = scmp.eq.s32.totalorder %s23, 0
      %p118 = por %p116, %p117
      %p119 = scmp.le.s32.totalorder 1, %s17
      %p120 = scmp.lt.s32.totalorder %s17, 3
      %p121 = pnand %p119, %p120
      %p122 = pneg %p121
      // Predicated region
      $region9: #{tpu_custom_call.1} parent=5 // pred_check
        _
      $region10: #{tpu_custom_call.1} parent=5 // pred_check_branch
        %124 = sbr.rel (%p121) target = $region12
      $region11: #{tpu_custom_call.1} parent=5 // pred_region
        %s125 = ssub.s32 %s17, 1
        // Predicated region
        $region13: #{tpu_custom_call.1} parent=11 // pred_check
          %p126 = pneg %p38
        $region14: #{tpu_custom_call.1} parent=11 // pred_check_branch
          %128 = sbr.rel (%p126) target = $region16
        $region15: #{tpu_custom_call.1} parent=11 // pred_region
          %130 = vsyncadd [#allocation7], 0
          %s132 = sshll.u32 %s0, 4
          %s133 = int_to_ptr.hbm [resolvable:$true] %s132
          %135 = dma.hbm_to_smem %s133, 16, [#allocation4], [#allocation7]
        $region16: #{tpu_custom_call.1} parent=11 // pred_fallthru
          _
        // Predicated region
        $region17: #{tpu_custom_call.1} parent=11 // pred_check
          %p136 = pneg %p59
        $region18: #{tpu_custom_call.1} parent=11 // pred_check_branch
          %138 = sbr.rel (%p136) target = $region20
        $region19: #{tpu_custom_call.1} parent=11 // pred_region
          %140 = vsyncadd [#allocation5], 0
          %s142 = sshll.u32 %s1, 4
          %s143 = int_to_ptr.hbm [resolvable:$true] %s142
          %s144 = sshll.u32 [#allocation8], 4
          %s145 = int_to_ptr.vmem [resolvable:$true] %s144
          %147 = dma.hbm_to_vmem [thread:$0]  %s143, 384, %s145, [#allocation5]
        $region20: #{tpu_custom_call.1} parent=11 // pred_fallthru
          _
      $region12: #{tpu_custom_call.1} parent=5 // pred_fallthru
        _
      %p148 = scmp.lt.s32.totalorder %s17, 2
      // Predicated region
      $region21: #{tpu_custom_call.1} parent=5 // pred_check
        %p149 = pneg %p148
      $region22: #{tpu_custom_call.1} parent=5 // pred_check_branch
        %151 = sbr.rel (%p149) target = $region24
      $region23: #{tpu_custom_call.1} parent=5 // pred_region
        // Predicated region
        $region25: #{tpu_custom_call.1} parent=23 // pred_check
          %p152 = pneg %p79
        $region26: #{tpu_custom_call.1} parent=23 // pred_check_branch
          %154 = sbr.rel (%p152) target = $region28
        $region27: #{tpu_custom_call.1} parent=23 // pred_region
          %s155 = sand.u32 %s69, 1
          %s156 = scalar_lea.sflag [#allocation10], %s155
          %s157 = sand.u32 %s69, 1
          %s158 = smul.addr %s157, 8
          %s159 = scalar_lea.vmem [#allocation9], %s158
          %161 = vsyncadd %s156, 0
          %s162 = smul.addr %s17, 2
          %s163 = smul.addr %s162, 4
          %s164 = scalar_lea.hbm %s2, %s163
          %s166 = sshll.u32 %s164, 4
          %s167 = int_to_ptr.hbm [resolvable:$true] %s166
          %s168 = sshll.u32 %s159, 4
          %s169 = int_to_ptr.vmem [resolvable:$true] %s168
          %171 = dma.hbm_to_vmem [thread:$0]  %s167, 128, %s169, %s156
        $region28: #{tpu_custom_call.1} parent=23 // pred_fallthru
          _
      $region24: #{tpu_custom_call.1} parent=5 // pred_fallthru
        _
      %p172 = scmp.le.s32.totalorder 1, %s17
      %p173 = scmp.lt.s32.totalorder %s17, 3
      %p174 = pnand %p172, %p173
      %p175 = pneg %p174
      // Predicated region
      $region29: #{tpu_custom_call.1} parent=5 // pred_check
        _
      $region30: #{tpu_custom_call.1} parent=5 // pred_check_branch
        %177 = sbr.rel (%p174) target = $region32
      $region31: #{tpu_custom_call.1} parent=5 // pred_region
        %s178 = ssub.s32 %s17, 1
        // Predicated region
        $region33: #{tpu_custom_call.1} parent=31 // pred_check
          %p179 = pneg %p38
        $region34: #{tpu_custom_call.1} parent=31 // pred_check_branch
          %181 = sbr.rel (%p179) target = $region36
        $region35: #{tpu_custom_call.1} parent=31 // pred_region
          %183 = dma.done [#allocation7], 16
        $region36: #{tpu_custom_call.1} parent=31 // pred_fallthru
          _
        // Predicated region
        $region37: #{tpu_custom_call.1} parent=31 // pred_check
          %p184 = pneg %p59
        $region38: #{tpu_custom_call.1} parent=31 // pred_check_branch
          %186 = sbr.rel (%p184) target = $region40
        $region39: #{tpu_custom_call.1} parent=31 // pred_region
          %188 = dma.done [#allocation5], 384
        $region40: #{tpu_custom_call.1} parent=31 // pred_fallthru
          _
        %s189 = sand.u32 %s72, 1
        %s190 = scalar_lea.sflag [#allocation10], %s189
        %s191 = sand.u32 %s72, 1
        %s192 = smul.addr %s191, 8
        %s193 = scalar_lea.vmem [#allocation9], %s192
        // Predicated region
        $region41: #{tpu_custom_call.1} parent=31 // pred_check
          %p194 = pneg %p85
        $region42: #{tpu_custom_call.1} parent=31 // pred_check_branch
          %196 = sbr.rel (%p194) target = $region44
        $region43: #{tpu_custom_call.1} parent=31 // pred_region
          %198 = dma.done %s190, 128
        $region44: #{tpu_custom_call.1} parent=31 // pred_fallthru
          _
        %199 = sfence
        %p200 = pneg %p38
        %p201 = pneg %p35
        %p202 = pneg %p59
        %p203 = pneg %p56
        %s204 = sand.u32 %s72, 1
        %s205 = scalar_lea.sflag [#allocation10], %s204
        %s206 = sand.u32 %s72, 1
        %s207 = smul.addr %s206, 8
        %s208 = scalar_lea.vmem [#allocation9], %s207
        %p209 = pneg %p85
        %p210 = pneg %p82
        %p211 = pneg %p111
        %p212 = pneg %p108
        %s213 = sand.u32 %s98, 1
        %s214 = scalar_lea.sflag [#allocation6], %s213
        %s215 = sand.u32 %s98, 1
        %s216 = smul.addr %s215, 8
        %s217 = scalar_lea.vmem [#allocation11], %s216
        %v218 = vld [vmem:[%s193] sm:$0xff]
        %220 = vst [vmem:[#allocation1] ss:$2 sm:$0xff] %v218
        %v221 = vld.sshfl [vmem:[#allocation1] sm:$0xff pattern:$0x75316420]
        %v222 = vld.sshfl [vmem:[#allocation1 + $0x8] sm:$0xff pattern:$0x75316420]
        %vm225 = vcmask 1043456
        %v226 = vsel %vm225, %v221, 0.0
        %v227 = vrot.slane %v226, 4
        %v228 = vadd.f32 %v226, %v227
        %v229 = vrot.slane %v228, 2
        %v230 = vadd.f32 %v228, %v229
        %v231 = vrot.slane %v230, 1
        %v232 = vadd.f32 %v230, %v231
        %v233 = vsel %vm225, %v222, 0.0
        %v234 = vrot.slane %v233, 4
        %v235 = vadd.f32 %v233, %v234
        %v236 = vrot.slane %v235, 2
        %v237 = vadd.f32 %v235, %v236
        %v238 = vrot.slane %v237, 1
        %v239 = vadd.f32 %v237, %v238
        %240 = vst [vmem:[#allocation1] ss:$2 sm:$0xff] %v218
        %v241 = vld.sshfl [vmem:[#allocation1] sm:$0xff pattern:$0x75316420]
        %v242 = vld.sshfl [vmem:[#allocation1 + $0x8] sm:$0xff pattern:$0x75316420]
        %v245 = vsel %vm225, %v241, -inf
        %v246 = vrot.slane %v245, 4
        %v247 = vmax.f32 %v245, %v246
        %v248 = vrot.slane %v247, 2
        %v249 = vmax.f32 %v247, %v248
        %v250 = vrot.slane %v249, 1
        %v251 = vmax.f32 %v249, %v250
        %v252 = vsel %vm225, %v242, -inf
        %v253 = vrot.slane %v252, 4
        %v254 = vmax.f32 %v252, %v253
        %v255 = vrot.slane %v254, 2
        %v256 = vmax.f32 %v254, %v255
        %v257 = vrot.slane %v256, 1
        %v258 = vmax.f32 %v256, %v257
        %v259 = vlaneseq
        %vm260 = vcmp.ge.s32.totalorder %v259, 0
        %vm261 = vcmp.lt.s32.totalorder %v259, 390
        %vm262 = vmand %vm260, %vm261
        %263 = vst.msk [vmem:[#allocation2] sm:$0xf] %vm262, 0.0
        %264 = vst.msk [vmem:[#allocation3] sm:$0xf] %vm262, 0.0
        %v267 = vrot.slane %v239, 7
        %vm268 = vcmask 1040384
        %v269 = vsel %vm268, %v232, %v267
        %270 = vrot.lane.b32.xlu0 %v269, 51
        %v271 = vpop.permute.xlu0 %270
        %v272 = vrot.slane %v271, 7
        %vm273 = vcmask 416768
        %v274 = vsel %vm273, %v272, %v271
        %vm276 = vcmp.ge.s32.totalorder %v259, 51
        %vm277 = vcmp.lt.s32.totalorder %v259, 307
        %vm278 = vmand %vm276, %vm277
        %279 = vst.msk [vmem:[#allocation2] sm:$0x7] %vm278, %v274
        %v282 = vrot.slane %v258, 7
        %v283 = vsel %vm268, %v251, %v282
        %284 = vrot.lane.b32.xlu0 %v283, 51
        %v285 = vpop.permute.xlu0 %284
        %v286 = vrot.slane %v285, 7
        %v287 = vsel %vm273, %v286, %v285
        %289 = vst.msk [vmem:[#allocation3] sm:$0x7] %vm278, %v287
        %v290 = vld [vmem:[#allocation8] ss:$8 sm:$0x7]
        %v291 = vld [vmem:[#allocation2] sm:$0x7]
        %v292 = vmul.f32 %v291, %v290
        %v293 = vld [vmem:[#allocation3] sm:$0x7]
        %v294 = vmul.f32 %v293, %v290
        %s295 = sld [smem:[#allocation4]]
        %v296 = vstv %s295
        %v297 = vmul.f32 %v296, %v292
        %v298 = vadd.f32 %v297, 0.0
        %s299 = sld [smem:[#allocation4 + $0x31]]
        %v300 = vstv %s299
        %v301 = vmul.f32 %v300, %v294
        %v302 = vadd.f32 %v298, %v301
        %s303 = sld [smem:[#allocation4 + $0x7]]
        %v304 = vstv %s303
        %v305 = vmul.f32 %v304, %v292
        %v306 = vadd.f32 %v305, 0.0
        %s307 = sld [smem:[#allocation4 + $0x38]]
        %v308 = vstv %s307
        %v309 = vmul.f32 %v308, %v294
        %v310 = vadd.f32 %v306, %v309
        %s311 = sld [smem:[#allocation4 + $0xe]]
        %v312 = vstv %s311
        %v313 = vmul.f32 %v312, %v292
        %v314 = vadd.f32 %v313, 0.0
        %s315 = sld [smem:[#allocation4 + $0x3f]]
        %v316 = vstv %s315
        %v317 = vmul.f32 %v316, %v294
        %v318 = vadd.f32 %v314, %v317
        %s319 = sld [smem:[#allocation4 + $0x15]]
        %v320 = vstv %s319
        %v321 = vmul.f32 %v320, %v292
        %v322 = vadd.f32 %v321, 0.0
        %s323 = sld [smem:[#allocation4 + $0x46]]
        %v324 = vstv %s323
        %v325 = vmul.f32 %v324, %v294
        %v326 = vadd.f32 %v322, %v325
        %s327 = sld [smem:[#allocation4 + $0x1c]]
        %v328 = vstv %s327
        %v329 = vmul.f32 %v328, %v292
        %v330 = vadd.f32 %v329, 0.0
        %s331 = sld [smem:[#allocation4 + $0x4d]]
        %v332 = vstv %s331
        %v333 = vmul.f32 %v332, %v294
        %v334 = vadd.f32 %v330, %v333
        %s335 = sld [smem:[#allocation4 + $0x23]]
        %v336 = vstv %s335
        %v337 = vmul.f32 %v336, %v292
        %v338 = vadd.f32 %v337, 0.0
        %s339 = sld [smem:[#allocation4 + $0x54]]
        %v340 = vstv %s339
        %v341 = vmul.f32 %v340, %v294
        %v342 = vadd.f32 %v338, %v341
        %s343 = sld [smem:[#allocation4 + $0x2a]]
        %v344 = vstv %s343
        %v345 = vmul.f32 %v344, %v292
        %v346 = vadd.f32 %v345, 0.0
        %s347 = sld [smem:[#allocation4 + $0x5b]]
        %v348 = vstv %s347
        %v349 = vmul.f32 %v348, %v294
        %v350 = vadd.f32 %v346, %v349
        %s351 = scalar_lea.vmem [#allocation8], 1
        %v352 = vld [vmem:[%s351] ss:$8 sm:$0x7]
        %v353 = vld [vmem:[#allocation2] sm:$0xf]
        %355 = vrot.lane.b32.xlu0 %v352, 1
        %v356 = vpop.permute.xlu0 %355
        %v357 = vrot.slane %v356, 7
        %vm358 = vcmask 7168
        %v359 = vsel %vm358, %v357, %v356
        %v361 = vmul.f32 %v353, %v359
        %v362 = vld [vmem:[#allocation3] sm:$0xf]
        %v363 = vmul.f32 %v362, %v359
        %s364 = sld [smem:[#allocation4 + $0x1]]
        %v365 = vstv %s364
        %v366 = vmul.f32 %v365, %v361
        %368 = vrot.lane.b32.xlu0 %v366, 127
        %v369 = vpop.permute.xlu0 %368
        %v370 = vrot.slane %v369, 1
        %vm371 = vcmask 1039360
        %v372 = vsel %vm371, %v369, %v370
        %v374 = vadd.f32 %v302, %v372
        %s375 = sld [smem:[#allocation4 + $0x32]]
        %v376 = vstv %s375
        %v377 = vmul.f32 %v376, %v363
        %379 = vrot.lane.b32.xlu0 %v377, 127
        %v380 = vpop.permute.xlu0 %379
        %v381 = vrot.slane %v380, 1
        %v382 = vsel %vm371, %v380, %v381
        %v384 = vadd.f32 %v374, %v382
        %s385 = sld [smem:[#allocation4 + $0x8]]
        %v386 = vstv %s385
        %v387 = vmul.f32 %v386, %v361
        %389 = vrot.lane.b32.xlu0 %v387, 127
        %v390 = vpop.permute.xlu0 %389
        %v391 = vrot.slane %v390, 1
        %v392 = vsel %vm371, %v390, %v391
        %v394 = vadd.f32 %v310, %v392
        %s395 = sld [smem:[#allocation4 + $0x39]]
        %v396 = vstv %s395
        %v397 = vmul.f32 %v396, %v363
        %399 = vrot.lane.b32.xlu0 %v397, 127
        %v400 = vpop.permute.xlu0 %399
        %v401 = vrot.slane %v400, 1
        %v402 = vsel %vm371, %v400, %v401
        %v404 = vadd.f32 %v394, %v402
        %s405 = sld [smem:[#allocation4 + $0xf]]
        %v406 = vstv %s405
        %v407 = vmul.f32 %v406, %v361
        %409 = vrot.lane.b32.xlu0 %v407, 127
        %v410 = vpop.permute.xlu0 %409
        %v411 = vrot.slane %v410, 1
        %v412 = vsel %vm371, %v410, %v411
        %v414 = vadd.f32 %v318, %v412
        %s415 = sld [smem:[#allocation4 + $0x40]]
        %v416 = vstv %s415
        %v417 = vmul.f32 %v416, %v363
        %419 = vrot.lane.b32.xlu0 %v417, 127
        %v420 = vpop.permute.xlu0 %419
        %v421 = vrot.slane %v420, 1
        %v422 = vsel %vm371, %v420, %v421
        %v424 = vadd.f32 %v414, %v422
        %s425 = sld [smem:[#allocation4 + $0x16]]
        %v426 = vstv %s425
        %v427 = vmul.f32 %v426, %v361
        %429 = vrot.lane.b32.xlu0 %v427, 127
        %v430 = vpop.permute.xlu0 %429
        %v431 = vrot.slane %v430, 1
        %v432 = vsel %vm371, %v430, %v431
        %v434 = vadd.f32 %v326, %v432
        %s435 = sld [smem:[#allocation4 + $0x47]]
        %v436 = vstv %s435
        %v437 = vmul.f32 %v436, %v363
        %439 = vrot.lane.b32.xlu0 %v437, 127
        %v440 = vpop.permute.xlu0 %439
        %v441 = vrot.slane %v440, 1
        %v442 = vsel %vm371, %v440, %v441
        %v444 = vadd.f32 %v434, %v442
        %s445 = sld [smem:[#allocation4 + $0x1d]]
        %v446 = vstv %s445
        %v447 = vmul.f32 %v446, %v361
        %449 = vrot.lane.b32.xlu0 %v447, 127
        %v450 = vpop.permute.xlu0 %449
        %v451 = vrot.slane %v450, 1
        %v452 = vsel %vm371, %v450, %v451
        %v454 = vadd.f32 %v334, %v452
        %s455 = sld [smem:[#allocation4 + $0x4e]]
        %v456 = vstv %s455
        %v457 = vmul.f32 %v456, %v363
        %459 = vrot.lane.b32.xlu0 %v457, 127
        %v460 = vpop.permute.xlu0 %459
        %v461 = vrot.slane %v460, 1
        %v462 = vsel %vm371, %v460, %v461
        %v464 = vadd.f32 %v454, %v462
        %s465 = sld [smem:[#allocation4 + $0x24]]
        %v466 = vstv %s465
        %v467 = vmul.f32 %v466, %v361
        %469 = vrot.lane.b32.xlu0 %v467, 127
        %v470 = vpop.permute.xlu0 %469
        %v471 = vrot.slane %v470, 1
        %v472 = vsel %vm371, %v470, %v471
        %v474 = vadd.f32 %v342, %v472
        %s475 = sld [smem:[#allocation4 + $0x55]]
        %v476 = vstv %s475
        %v477 = vmul.f32 %v476, %v363
        %479 = vrot.lane.b32.xlu0 %v477, 127
        %v480 = vpop.permute.xlu0 %479
        %v481 = vrot.slane %v480, 1
        %v482 = vsel %vm371, %v480, %v481
        %v484 = vadd.f32 %v474, %v482
        %s485 = sld [smem:[#allocation4 + $0x2b]]
        %v486 = vstv %s485
        %v487 = vmul.f32 %v486, %v361
        %489 = vrot.lane.b32.xlu0 %v487, 127
        %v490 = vpop.permute.xlu0 %489
        %v491 = vrot.slane %v490, 1
        %v492 = vsel %vm371, %v490, %v491
        %v494 = vadd.f32 %v350, %v492
        %s495 = sld [smem:[#allocation4 + $0x5c]]
        %v496 = vstv %s495
        %v497 = vmul.f32 %v496, %v363
        %499 = vrot.lane.b32.xlu0 %v497, 127
        %v500 = vpop.permute.xlu0 %499
        %v501 = vrot.slane %v500, 1
        %v502 = vsel %vm371, %v500, %v501
        %v504 = vadd.f32 %v494, %v502
        %s505 = scalar_lea.vmem [#allocation8], 2
        %v506 = vld [vmem:[%s505] ss:$8 sm:$0x7]
        %508 = vrot.lane.b32.xlu0 %v506, 2
        %v509 = vpop.permute.xlu0 %508
        %v510 = vrot.slane %v509, 7
        %vm511 = vcmask 15360
        %v512 = vsel %vm511, %v510, %v509
        %v514 = vmul.f32 %v353, %v512
        %v515 = vmul.f32 %v362, %v512
        %s516 = sld [smem:[#allocation4 + $0x2]]
        %v517 = vstv %s516
        %v518 = vmul.f32 %v517, %v514
        %520 = vrot.lane.b32.xlu0 %v518, 126
        %v521 = vpop.permute.xlu0 %520
        %v522 = vrot.slane %v521, 1
        %vm523 = vcmask 1031168
        %v524 = vsel %vm523, %v521, %v522
        %v526 = vadd.f32 %v384, %v524
        %s527 = sld [smem:[#allocation4 + $0x33]]
        %v528 = vstv %s527
        %v529 = vmul.f32 %v528, %v515
        %531 = vrot.lane.b32.xlu0 %v529, 126
        %v532 = vpop.permute.xlu0 %531
        %v533 = vrot.slane %v532, 1
        %v534 = vsel %vm523, %v532, %v533
        %v536 = vadd.f32 %v526, %v534
        %s537 = sld [smem:[#allocation4 + $0x9]]
        %v538 = vstv %s537
        %v539 = vmul.f32 %v538, %v514
        %541 = vrot.lane.b32.xlu0 %v539, 126
        %v542 = vpop.permute.xlu0 %541
        %v543 = vrot.slane %v542, 1
        %v544 = vsel %vm523, %v542, %v543
        %v546 = vadd.f32 %v404, %v544
        %s547 = sld [smem:[#allocation4 + $0x3a]]
        %v548 = vstv %s547
        %v549 = vmul.f32 %v548, %v515
        %551 = vrot.lane.b32.xlu0 %v549, 126
        %v552 = vpop.permute.xlu0 %551
        %v553 = vrot.slane %v552, 1
        %v554 = vsel %vm523, %v552, %v553
        %v556 = vadd.f32 %v546, %v554
        %s557 = sld [smem:[#allocation4 + $0x10]]
        %v558 = vstv %s557
        %v559 = vmul.f32 %v558, %v514
        %561 = vrot.lane.b32.xlu0 %v559, 126
        %v562 = vpop.permute.xlu0 %561
        %v563 = vrot.slane %v562, 1
        %v564 = vsel %vm523, %v562, %v563
        %v566 = vadd.f32 %v424, %v564
        %s567 = sld [smem:[#allocation4 + $0x41]]
        %v568 = vstv %s567
        %v569 = vmul.f32 %v568, %v515
        %571 = vrot.lane.b32.xlu0 %v569, 126
        %v572 = vpop.permute.xlu0 %571
        %v573 = vrot.slane %v572, 1
        %v574 = vsel %vm523, %v572, %v573
        %v576 = vadd.f32 %v566, %v574
        %s577 = sld [smem:[#allocation4 + $0x17]]
        %v578 = vstv %s577
        %v579 = vmul.f32 %v578, %v514
        %581 = vrot.lane.b32.xlu0 %v579, 126
        %v582 = vpop.permute.xlu0 %581
        %v583 = vrot.slane %v582, 1
        %v584 = vsel %vm523, %v582, %v583
        %v586 = vadd.f32 %v444, %v584
        %s587 = sld [smem:[#allocation4 + $0x48]]
        %v588 = vstv %s587
        %v589 = vmul.f32 %v588, %v515
        %591 = vrot.lane.b32.xlu0 %v589, 126
        %v592 = vpop.permute.xlu0 %591
        %v593 = vrot.slane %v592, 1
        %v594 = vsel %vm523, %v592, %v593
        %v596 = vadd.f32 %v586, %v594
        %s597 = sld [smem:[#allocation4 + $0x1e]]
        %v598 = vstv %s597
        %v599 = vmul.f32 %v598, %v514
        %601 = vrot.lane.b32.xlu0 %v599, 126
        %v602 = vpop.permute.xlu0 %601
        %v603 = vrot.slane %v602, 1
        %v604 = vsel %vm523, %v602, %v603
        %v606 = vadd.f32 %v464, %v604
        %s607 = sld [smem:[#allocation4 + $0x4f]]
        %v608 = vstv %s607
        %v609 = vmul.f32 %v608, %v515
        %611 = vrot.lane.b32.xlu0 %v609, 126
        %v612 = vpop.permute.xlu0 %611
        %v613 = vrot.slane %v612, 1
        %v614 = vsel %vm523, %v612, %v613
        %v616 = vadd.f32 %v606, %v614
        %s617 = sld [smem:[#allocation4 + $0x25]]
        %v618 = vstv %s617
        %v619 = vmul.f32 %v618, %v514
        %621 = vrot.lane.b32.xlu0 %v619, 126
        %v622 = vpop.permute.xlu0 %621
        %v623 = vrot.slane %v622, 1
        %v624 = vsel %vm523, %v622, %v623
        %v626 = vadd.f32 %v484, %v624
        %s627 = sld [smem:[#allocation4 + $0x56]]
        %v628 = vstv %s627
        %v629 = vmul.f32 %v628, %v515
        %631 = vrot.lane.b32.xlu0 %v629, 126
        %v632 = vpop.permute.xlu0 %631
        %v633 = vrot.slane %v632, 1
        %v634 = vsel %vm523, %v632, %v633
        %v636 = vadd.f32 %v626, %v634
        %s637 = sld [smem:[#allocation4 + $0x2c]]
        %v638 = vstv %s637
        %v639 = vmul.f32 %v638, %v514
        %641 = vrot.lane.b32.xlu0 %v639, 126
        %v642 = vpop.permute.xlu0 %641
        %v643 = vrot.slane %v642, 1
        %v644 = vsel %vm523, %v642, %v643
        %v646 = vadd.f32 %v504, %v644
        %s647 = sld [smem:[#allocation4 + $0x5d]]
        %v648 = vstv %s647
        %v649 = vmul.f32 %v648, %v515
        %651 = vrot.lane.b32.xlu0 %v649, 126
        %v652 = vpop.permute.xlu0 %651
        %v653 = vrot.slane %v652, 1
        %v654 = vsel %vm523, %v652, %v653
        %v656 = vadd.f32 %v646, %v654
        %s657 = scalar_lea.vmem [#allocation8], 3
        %v658 = vld [vmem:[%s657] ss:$8 sm:$0x7]
        %660 = vrot.lane.b32.xlu0 %v658, 3
        %v661 = vpop.permute.xlu0 %660
        %v662 = vrot.slane %v661, 7
        %vm663 = vcmask 23552
        %v664 = vsel %vm663, %v662, %v661
        %v666 = vmul.f32 %v353, %v664
        %v667 = vmul.f32 %v362, %v664
        %s668 = sld [smem:[#allocation4 + $0x3]]
        %v669 = vstv %s668
        %v670 = vmul.f32 %v669, %v666
        %672 = vrot.lane.b32.xlu0 %v670, 125
        %v673 = vpop.permute.xlu0 %672
        %v674 = vrot.slane %v673, 1
        %vm675 = vcmask 1022976
        %v676 = vsel %vm675, %v673, %v674
        %v678 = vadd.f32 %v536, %v676
        %s679 = sld [smem:[#allocation4 + $0x34]]
        %v680 = vstv %s679
        %v681 = vmul.f32 %v680, %v667
        %683 = vrot.lane.b32.xlu0 %v681, 125
        %v684 = vpop.permute.xlu0 %683
        %v685 = vrot.slane %v684, 1
        %v686 = vsel %vm675, %v684, %v685
        %v688 = vadd.f32 %v678, %v686
        %s689 = sld [smem:[#allocation4 + $0xa]]
        %v690 = vstv %s689
        %v691 = vmul.f32 %v690, %v666
        %693 = vrot.lane.b32.xlu0 %v691, 125
        %v694 = vpop.permute.xlu0 %693
        %v695 = vrot.slane %v694, 1
        %v696 = vsel %vm675, %v694, %v695
        %v698 = vadd.f32 %v556, %v696
        %s699 = sld [smem:[#allocation4 + $0x3b]]
        %v700 = vstv %s699
        %v701 = vmul.f32 %v700, %v667
        %703 = vrot.lane.b32.xlu0 %v701, 125
        %v704 = vpop.permute.xlu0 %703
        %v705 = vrot.slane %v704, 1
        %v706 = vsel %vm675, %v704, %v705
        %v708 = vadd.f32 %v698, %v706
        %s709 = sld [smem:[#allocation4 + $0x11]]
        %v710 = vstv %s709
        %v711 = vmul.f32 %v710, %v666
        %713 = vrot.lane.b32.xlu0 %v711, 125
        %v714 = vpop.permute.xlu0 %713
        %v715 = vrot.slane %v714, 1
        %v716 = vsel %vm675, %v714, %v715
        %v718 = vadd.f32 %v576, %v716
        %s719 = sld [smem:[#allocation4 + $0x42]]
        %v720 = vstv %s719
        %v721 = vmul.f32 %v720, %v667
        %723 = vrot.lane.b32.xlu0 %v721, 125
        %v724 = vpop.permute.xlu0 %723
        %v725 = vrot.slane %v724, 1
        %v726 = vsel %vm675, %v724, %v725
        %v728 = vadd.f32 %v718, %v726
        %s729 = sld [smem:[#allocation4 + $0x18]]
        %v730 = vstv %s729
        %v731 = vmul.f32 %v730, %v666
        %733 = vrot.lane.b32.xlu0 %v731, 125
        %v734 = vpop.permute.xlu0 %733
        %v735 = vrot.slane %v734, 1
        %v736 = vsel %vm675, %v734, %v735
        %v738 = vadd.f32 %v596, %v736
        %s739 = sld [smem:[#allocation4 + $0x49]]
        %v740 = vstv %s739
        %v741 = vmul.f32 %v740, %v667
        %743 = vrot.lane.b32.xlu0 %v741, 125
        %v744 = vpop.permute.xlu0 %743
        %v745 = vrot.slane %v744, 1
        %v746 = vsel %vm675, %v744, %v745
        %v748 = vadd.f32 %v738, %v746
        %s749 = sld [smem:[#allocation4 + $0x1f]]
        %v750 = vstv %s749
        %v751 = vmul.f32 %v750, %v666
        %753 = vrot.lane.b32.xlu0 %v751, 125
        %v754 = vpop.permute.xlu0 %753
        %v755 = vrot.slane %v754, 1
        %v756 = vsel %vm675, %v754, %v755
        %v758 = vadd.f32 %v616, %v756
        %s759 = sld [smem:[#allocation4 + $0x50]]
        %v760 = vstv %s759
        %v761 = vmul.f32 %v760, %v667
        %763 = vrot.lane.b32.xlu0 %v761, 125
        %v764 = vpop.permute.xlu0 %763
        %v765 = vrot.slane %v764, 1
        %v766 = vsel %vm675, %v764, %v765
        %v768 = vadd.f32 %v758, %v766
        %s769 = sld [smem:[#allocation4 + $0x26]]
        %v770 = vstv %s769
        %v771 = vmul.f32 %v770, %v666
        %773 = vrot.lane.b32.xlu0 %v771, 125
        %v774 = vpop.permute.xlu0 %773
        %v775 = vrot.slane %v774, 1
        %v776 = vsel %vm675, %v774, %v775
        %v778 = vadd.f32 %v636, %v776
        %s779 = sld [smem:[#allocation4 + $0x57]]
        %v780 = vstv %s779
        %v781 = vmul.f32 %v780, %v667
        %783 = vrot.lane.b32.xlu0 %v781, 125
        %v784 = vpop.permute.xlu0 %783
        %v785 = vrot.slane %v784, 1
        %v786 = vsel %vm675, %v784, %v785
        %v788 = vadd.f32 %v778, %v786
        %s789 = sld [smem:[#allocation4 + $0x2d]]
        %v790 = vstv %s789
        %v791 = vmul.f32 %v790, %v666
        %793 = vrot.lane.b32.xlu0 %v791, 125
        %v794 = vpop.permute.xlu0 %793
        %v795 = vrot.slane %v794, 1
        %v796 = vsel %vm675, %v794, %v795
        %v798 = vadd.f32 %v656, %v796
        %s799 = sld [smem:[#allocation4 + $0x5e]]
        %v800 = vstv %s799
        %v801 = vmul.f32 %v800, %v667
        %803 = vrot.lane.b32.xlu0 %v801, 125
        %v804 = vpop.permute.xlu0 %803
        %v805 = vrot.slane %v804, 1
        %v806 = vsel %vm675, %v804, %v805
        %v808 = vadd.f32 %v798, %v806
        %s809 = scalar_lea.vmem [#allocation8], 4
        %v810 = vld [vmem:[%s809] ss:$8 sm:$0x7]
        %812 = vrot.lane.b32.xlu0 %v810, 4
        %v813 = vpop.permute.xlu0 %812
        %v814 = vrot.slane %v813, 7
        %vm815 = vcmask 31744
        %v816 = vsel %vm815, %v814, %v813
        %v818 = vmul.f32 %v353, %v816
        %v819 = vmul.f32 %v362, %v816
        %s820 = sld [smem:[#allocation4 + $0x4]]
        %v821 = vstv %s820
        %v822 = vmul.f32 %v821, %v818
        %824 = vrot.lane.b32.xlu0 %v822, 124
        %v825 = vpop.permute.xlu0 %824
        %v826 = vrot.slane %v825, 1
        %vm827 = vcmask 1014784
        %v828 = vsel %vm827, %v825, %v826
        %v830 = vadd.f32 %v688, %v828
        %s831 = sld [smem:[#allocation4 + $0x35]]
        %v832 = vstv %s831
        %v833 = vmul.f32 %v832, %v819
        %835 = vrot.lane.b32.xlu0 %v833, 124
        %v836 = vpop.permute.xlu0 %835
        %v837 = vrot.slane %v836, 1
        %v838 = vsel %vm827, %v836, %v837
        %v840 = vadd.f32 %v830, %v838
        %s841 = sld [smem:[#allocation4 + $0xb]]
        %v842 = vstv %s841
        %v843 = vmul.f32 %v842, %v818
        %845 = vrot.lane.b32.xlu0 %v843, 124
        %v846 = vpop.permute.xlu0 %845
        %v847 = vrot.slane %v846, 1
        %v848 = vsel %vm827, %v846, %v847
        %v850 = vadd.f32 %v708, %v848
        %s851 = sld [smem:[#allocation4 + $0x3c]]
        %v852 = vstv %s851
        %v853 = vmul.f32 %v852, %v819
        %855 = vrot.lane.b32.xlu0 %v853, 124
        %v856 = vpop.permute.xlu0 %855
        %v857 = vrot.slane %v856, 1
        %v858 = vsel %vm827, %v856, %v857
        %v860 = vadd.f32 %v850, %v858
        %s861 = sld [smem:[#allocation4 + $0x12]]
        %v862 = vstv %s861
        %v863 = vmul.f32 %v862, %v818
        %865 = vrot.lane.b32.xlu0 %v863, 124
        %v866 = vpop.permute.xlu0 %865
        %v867 = vrot.slane %v866, 1
        %v868 = vsel %vm827, %v866, %v867
        %v870 = vadd.f32 %v728, %v868
        %s871 = sld [smem:[#allocation4 + $0x43]]
        %v872 = vstv %s871
        %v873 = vmul.f32 %v872, %v819
        %875 = vrot.lane.b32.xlu0 %v873, 124
        %v876 = vpop.permute.xlu0 %875
        %v877 = vrot.slane %v876, 1
        %v878 = vsel %vm827, %v876, %v877
        %v880 = vadd.f32 %v870, %v878
        %s881 = sld [smem:[#allocation4 + $0x19]]
        %v882 = vstv %s881
        %v883 = vmul.f32 %v882, %v818
        %885 = vrot.lane.b32.xlu0 %v883, 124
        %v886 = vpop.permute.xlu0 %885
        %v887 = vrot.slane %v886, 1
        %v888 = vsel %vm827, %v886, %v887
        %v890 = vadd.f32 %v748, %v888
        %s891 = sld [smem:[#allocation4 + $0x4a]]
        %v892 = vstv %s891
        %v893 = vmul.f32 %v892, %v819
        %895 = vrot.lane.b32.xlu0 %v893, 124
        %v896 = vpop.permute.xlu0 %895
        %v897 = vrot.slane %v896, 1
        %v898 = vsel %vm827, %v896, %v897
        %v900 = vadd.f32 %v890, %v898
        %s901 = sld [smem:[#allocation4 + $0x20]]
        %v902 = vstv %s901
        %v903 = vmul.f32 %v902, %v818
        %905 = vrot.lane.b32.xlu0 %v903, 124
        %v906 = vpop.permute.xlu0 %905
        %v907 = vrot.slane %v906, 1
        %v908 = vsel %vm827, %v906, %v907
        %v910 = vadd.f32 %v768, %v908
        %s911 = sld [smem:[#allocation4 + $0x51]]
        %v912 = vstv %s911
        %v913 = vmul.f32 %v912, %v819
        %915 = vrot.lane.b32.xlu0 %v913, 124
        %v916 = vpop.permute.xlu0 %915
        %v917 = vrot.slane %v916, 1
        %v918 = vsel %vm827, %v916, %v917
        %v920 = vadd.f32 %v910, %v918
        %s921 = sld [smem:[#allocation4 + $0x27]]
        %v922 = vstv %s921
        %v923 = vmul.f32 %v922, %v818
        %925 = vrot.lane.b32.xlu0 %v923, 124
        %v926 = vpop.permute.xlu0 %925
        %v927 = vrot.slane %v926, 1
        %v928 = vsel %vm827, %v926, %v927
        %v930 = vadd.f32 %v788, %v928
        %s931 = sld [smem:[#allocation4 + $0x58]]
        %v932 = vstv %s931
        %v933 = vmul.f32 %v932, %v819
        %935 = vrot.lane.b32.xlu0 %v933, 124
        %v936 = vpop.permute.xlu0 %935
        %v937 = vrot.slane %v936, 1
        %v938 = vsel %vm827, %v936, %v937
        %v940 = vadd.f32 %v930, %v938
        %s941 = sld [smem:[#allocation4 + $0x2e]]
        %v942 = vstv %s941
        %v943 = vmul.f32 %v942, %v818
        %945 = vrot.lane.b32.xlu0 %v943, 124
        %v946 = vpop.permute.xlu0 %945
        %v947 = vrot.slane %v946, 1
        %v948 = vsel %vm827, %v946, %v947
        %v950 = vadd.f32 %v808, %v948
        %s951 = sld [smem:[#allocation4 + $0x5f]]
        %v952 = vstv %s951
        %v953 = vmul.f32 %v952, %v819
        %955 = vrot.lane.b32.xlu0 %v953, 124
        %v956 = vpop.permute.xlu0 %955
        %v957 = vrot.slane %v956, 1
        %v958 = vsel %vm827, %v956, %v957
        %v960 = vadd.f32 %v950, %v958
        %s961 = scalar_lea.vmem [#allocation8], 5
        %v962 = vld [vmem:[%s961] ss:$8 sm:$0x7]
        %964 = vrot.lane.b32.xlu0 %v962, 5
        %v965 = vpop.permute.xlu0 %964
        %v966 = vrot.slane %v965, 7
        %vm967 = vcmask 39936
        %v968 = vsel %vm967, %v966, %v965
        %v970 = vmul.f32 %v353, %v968
        %v971 = vmul.f32 %v362, %v968
        %s972 = sld [smem:[#allocation4 + $0x5]]
        %v973 = vstv %s972
        %v974 = vmul.f32 %v973, %v970
        %976 = vrot.lane.b32.xlu0 %v974, 123
        %v977 = vpop.permute.xlu0 %976
        %v978 = vrot.slane %v977, 1
        %vm979 = vcmask 1006592
        %v980 = vsel %vm979, %v977, %v978
        %v982 = vadd.f32 %v840, %v980
        %s983 = sld [smem:[#allocation4 + $0x36]]
        %v984 = vstv %s983
        %v985 = vmul.f32 %v984, %v971
        %987 = vrot.lane.b32.xlu0 %v985, 123
        %v988 = vpop.permute.xlu0 %987
        %v989 = vrot.slane %v988, 1
        %v990 = vsel %vm979, %v988, %v989
        %v992 = vadd.f32 %v982, %v990
        %s993 = sld [smem:[#allocation4 + $0xc]]
        %v994 = vstv %s993
        %v995 = vmul.f32 %v994, %v970
        %997 = vrot.lane.b32.xlu0 %v995, 123
        %v998 = vpop.permute.xlu0 %997
        %v999 = vrot.slane %v998, 1
        %v1000 = vsel %vm979, %v998, %v999
        %v1002 = vadd.f32 %v860, %v1000
        %s1003 = sld [smem:[#allocation4 + $0x3d]]
        %v1004 = vstv %s1003
        %v1005 = vmul.f32 %v1004, %v971
        %1007 = vrot.lane.b32.xlu0 %v1005, 123
        %v1008 = vpop.permute.xlu0 %1007
        %v1009 = vrot.slane %v1008, 1
        %v1010 = vsel %vm979, %v1008, %v1009
        %v1012 = vadd.f32 %v1002, %v1010
        %s1013 = sld [smem:[#allocation4 + $0x13]]
        %v1014 = vstv %s1013
        %v1015 = vmul.f32 %v1014, %v970
        %1017 = vrot.lane.b32.xlu0 %v1015, 123
        %v1018 = vpop.permute.xlu0 %1017
        %v1019 = vrot.slane %v1018, 1
        %v1020 = vsel %vm979, %v1018, %v1019
        %v1022 = vadd.f32 %v880, %v1020
        %s1023 = sld [smem:[#allocation4 + $0x44]]
        %v1024 = vstv %s1023
        %v1025 = vmul.f32 %v1024, %v971
        %1027 = vrot.lane.b32.xlu0 %v1025, 123
        %v1028 = vpop.permute.xlu0 %1027
        %v1029 = vrot.slane %v1028, 1
        %v1030 = vsel %vm979, %v1028, %v1029
        %v1032 = vadd.f32 %v1022, %v1030
        %s1033 = sld [smem:[#allocation4 + $0x1a]]
        %v1034 = vstv %s1033
        %v1035 = vmul.f32 %v1034, %v970
        %1037 = vrot.lane.b32.xlu0 %v1035, 123
        %v1038 = vpop.permute.xlu0 %1037
        %v1039 = vrot.slane %v1038, 1
        %v1040 = vsel %vm979, %v1038, %v1039
        %v1042 = vadd.f32 %v900, %v1040
        %s1043 = sld [smem:[#allocation4 + $0x4b]]
        %v1044 = vstv %s1043
        %v1045 = vmul.f32 %v1044, %v971
        %1047 = vrot.lane.b32.xlu0 %v1045, 123
        %v1048 = vpop.permute.xlu0 %1047
        %v1049 = vrot.slane %v1048, 1
        %v1050 = vsel %vm979, %v1048, %v1049
        %v1052 = vadd.f32 %v1042, %v1050
        %s1053 = sld [smem:[#allocation4 + $0x21]]
        %v1054 = vstv %s1053
        %v1055 = vmul.f32 %v1054, %v970
        %1057 = vrot.lane.b32.xlu0 %v1055, 123
        %v1058 = vpop.permute.xlu0 %1057
        %v1059 = vrot.slane %v1058, 1
        %v1060 = vsel %vm979, %v1058, %v1059
        %v1062 = vadd.f32 %v920, %v1060
        %s1063 = sld [smem:[#allocation4 + $0x52]]
        %v1064 = vstv %s1063
        %v1065 = vmul.f32 %v1064, %v971
        %1067 = vrot.lane.b32.xlu0 %v1065, 123
        %v1068 = vpop.permute.xlu0 %1067
        %v1069 = vrot.slane %v1068, 1
        %v1070 = vsel %vm979, %v1068, %v1069
        %v1072 = vadd.f32 %v1062, %v1070
        %s1073 = sld [smem:[#allocation4 + $0x28]]
        %v1074 = vstv %s1073
        %v1075 = vmul.f32 %v1074, %v970
        %1077 = vrot.lane.b32.xlu0 %v1075, 123
        %v1078 = vpop.permute.xlu0 %1077
        %v1079 = vrot.slane %v1078, 1
        %v1080 = vsel %vm979, %v1078, %v1079
        %v1082 = vadd.f32 %v940, %v1080
        %s1083 = sld [smem:[#allocation4 + $0x59]]
        %v1084 = vstv %s1083
        %v1085 = vmul.f32 %v1084, %v971
        %1087 = vrot.lane.b32.xlu0 %v1085, 123
        %v1088 = vpop.permute.xlu0 %1087
        %v1089 = vrot.slane %v1088, 1
        %v1090 = vsel %vm979, %v1088, %v1089
        %v1092 = vadd.f32 %v1082, %v1090
        %s1093 = sld [smem:[#allocation4 + $0x2f]]
        %v1094 = vstv %s1093
        %v1095 = vmul.f32 %v1094, %v970
        %1097 = vrot.lane.b32.xlu0 %v1095, 123
        %v1098 = vpop.permute.xlu0 %1097
        %v1099 = vrot.slane %v1098, 1
        %v1100 = vsel %vm979, %v1098, %v1099
        %v1102 = vadd.f32 %v960, %v1100
        %s1103 = sld [smem:[#allocation4 + $0x60]]
        %v1104 = vstv %s1103
        %v1105 = vmul.f32 %v1104, %v971
        %1107 = vrot.lane.b32.xlu0 %v1105, 123
        %v1108 = vpop.permute.xlu0 %1107
        %v1109 = vrot.slane %v1108, 1
        %v1110 = vsel %vm979, %v1108, %v1109
        %v1112 = vadd.f32 %v1102, %v1110
        %s1113 = scalar_lea.vmem [#allocation8], 6
        %v1114 = vld [vmem:[%s1113] ss:$8 sm:$0x7]
        %1116 = vrot.lane.b32.xlu0 %v1114, 6
        %v1117 = vpop.permute.xlu0 %1116
        %v1118 = vrot.slane %v1117, 7
        %vm1119 = vcmask 48128
        %v1120 = vsel %vm1119, %v1118, %v1117
        %v1122 = vmul.f32 %v353, %v1120
        %v1123 = vmul.f32 %v362, %v1120
        %s1124 = sld [smem:[#allocation4 + $0x6]]
        %v1125 = vstv %s1124
        %v1126 = vmul.f32 %v1125, %v1122
        %1128 = vrot.lane.b32.xlu0 %v1126, 122
        %v1129 = vpop.permute.xlu0 %1128
        %v1130 = vrot.slane %v1129, 1
        %vm1131 = vcmask 998400
        %v1132 = vsel %vm1131, %v1129, %v1130
        %v1134 = vadd.f32 %v992, %v1132
        %s1135 = sld [smem:[#allocation4 + $0x37]]
        %v1136 = vstv %s1135
        %v1137 = vmul.f32 %v1136, %v1123
        %1139 = vrot.lane.b32.xlu0 %v1137, 122
        %v1140 = vpop.permute.xlu0 %1139
        %v1141 = vrot.slane %v1140, 1
        %v1142 = vsel %vm1131, %v1140, %v1141
        %v1144 = vadd.f32 %v1134, %v1142
        %s1145 = sld [smem:[#allocation4 + $0xd]]
        %v1146 = vstv %s1145
        %v1147 = vmul.f32 %v1146, %v1122
        %1149 = vrot.lane.b32.xlu0 %v1147, 122
        %v1150 = vpop.permute.xlu0 %1149
        %v1151 = vrot.slane %v1150, 1
        %v1152 = vsel %vm1131, %v1150, %v1151
        %v1154 = vadd.f32 %v1012, %v1152
        %s1155 = sld [smem:[#allocation4 + $0x3e]]
        %v1156 = vstv %s1155
        %v1157 = vmul.f32 %v1156, %v1123
        %1159 = vrot.lane.b32.xlu0 %v1157, 122
        %v1160 = vpop.permute.xlu0 %1159
        %v1161 = vrot.slane %v1160, 1
        %v1162 = vsel %vm1131, %v1160, %v1161
        %v1164 = vadd.f32 %v1154, %v1162
        %s1165 = sld [smem:[#allocation4 + $0x14]]
        %v1166 = vstv %s1165
        %v1167 = vmul.f32 %v1166, %v1122
        %1169 = vrot.lane.b32.xlu0 %v1167, 122
        %v1170 = vpop.permute.xlu0 %1169
        %v1171 = vrot.slane %v1170, 1
        %v1172 = vsel %vm1131, %v1170, %v1171
        %v1174 = vadd.f32 %v1032, %v1172
        %s1175 = sld [smem:[#allocation4 + $0x45]]
        %v1176 = vstv %s1175
        %v1177 = vmul.f32 %v1176, %v1123
        %1179 = vrot.lane.b32.xlu0 %v1177, 122
        %v1180 = vpop.permute.xlu0 %1179
        %v1181 = vrot.slane %v1180, 1
        %v1182 = vsel %vm1131, %v1180, %v1181
        %v1184 = vadd.f32 %v1174, %v1182
        %s1185 = sld [smem:[#allocation4 + $0x1b]]
        %v1186 = vstv %s1185
        %v1187 = vmul.f32 %v1186, %v1122
        %1189 = vrot.lane.b32.xlu0 %v1187, 122
        %v1190 = vpop.permute.xlu0 %1189
        %v1191 = vrot.slane %v1190, 1
        %v1192 = vsel %vm1131, %v1190, %v1191
        %v1194 = vadd.f32 %v1052, %v1192
        %s1195 = sld [smem:[#allocation4 + $0x4c]]
        %v1196 = vstv %s1195
        %v1197 = vmul.f32 %v1196, %v1123
        %1199 = vrot.lane.b32.xlu0 %v1197, 122
        %v1200 = vpop.permute.xlu0 %1199
        %v1201 = vrot.slane %v1200, 1
        %v1202 = vsel %vm1131, %v1200, %v1201
        %v1204 = vadd.f32 %v1194, %v1202
        %s1205 = sld [smem:[#allocation4 + $0x22]]
        %v1206 = vstv %s1205
        %v1207 = vmul.f32 %v1206, %v1122
        %1209 = vrot.lane.b32.xlu0 %v1207, 122
        %v1210 = vpop.permute.xlu0 %1209
        %v1211 = vrot.slane %v1210, 1
        %v1212 = vsel %vm1131, %v1210, %v1211
        %v1214 = vadd.f32 %v1072, %v1212
        %s1215 = sld [smem:[#allocation4 + $0x53]]
        %v1216 = vstv %s1215
        %v1217 = vmul.f32 %v1216, %v1123
        %1219 = vrot.lane.b32.xlu0 %v1217, 122
        %v1220 = vpop.permute.xlu0 %1219
        %v1221 = vrot.slane %v1220, 1
        %v1222 = vsel %vm1131, %v1220, %v1221
        %v1224 = vadd.f32 %v1214, %v1222
        %s1225 = sld [smem:[#allocation4 + $0x29]]
        %v1226 = vstv %s1225
        %v1227 = vmul.f32 %v1226, %v1122
        %1229 = vrot.lane.b32.xlu0 %v1227, 122
        %v1230 = vpop.permute.xlu0 %1229
        %v1231 = vrot.slane %v1230, 1
        %v1232 = vsel %vm1131, %v1230, %v1231
        %v1234 = vadd.f32 %v1092, %v1232
        %s1235 = sld [smem:[#allocation4 + $0x5a]]
        %v1236 = vstv %s1235
        %v1237 = vmul.f32 %v1236, %v1123
        %1239 = vrot.lane.b32.xlu0 %v1237, 122
        %v1240 = vpop.permute.xlu0 %1239
        %v1241 = vrot.slane %v1240, 1
        %v1242 = vsel %vm1131, %v1240, %v1241
        %v1244 = vadd.f32 %v1234, %v1242
        %s1245 = sld [smem:[#allocation4 + $0x30]]
        %v1246 = vstv %s1245
        %v1247 = vmul.f32 %v1246, %v1122
        %1249 = vrot.lane.b32.xlu0 %v1247, 122
        %v1250 = vpop.permute.xlu0 %1249
        %v1251 = vrot.slane %v1250, 1
        %v1252 = vsel %vm1131, %v1250, %v1251
        %v1254 = vadd.f32 %v1112, %v1252
        %s1255 = sld [smem:[#allocation4 + $0x61]]
        %v1256 = vstv %s1255
        %v1257 = vmul.f32 %v1256, %v1123
        %1259 = vrot.lane.b32.xlu0 %v1257, 122
        %v1260 = vpop.permute.xlu0 %1259
        %v1261 = vrot.slane %v1260, 1
        %v1262 = vsel %vm1131, %v1260, %v1261
        %v1264 = vadd.f32 %v1254, %v1262
        %v1265 = vadd.f32 %v1144, 0.0
        %1267 = vrot.lane.b32.xlu0 %v1164, 112
        %v1268 = vpop.permute.xlu0 %1267
        %v1269 = vrot.slane %v1268, 1
        %vm1270 = vcmask 916480
        %v1271 = vsel %vm1270, %v1268, %v1269
        %v1273 = vadd.f32 %v1265, %v1271
        %1275 = vrot.lane.b32.xlu0 %v1184, 96
        %v1276 = vpop.permute.xlu0 %1275
        %v1277 = vrot.slane %v1276, 1
        %vm1278 = vcmask 785408
        %v1279 = vsel %vm1278, %v1276, %v1277
        %v1281 = vadd.f32 %v1273, %v1279
        %1283 = vrot.lane.b32.xlu0 %v1204, 80
        %v1284 = vpop.permute.xlu0 %1283
        %v1285 = vrot.slane %v1284, 1
        %vm1286 = vcmask 654336
        %v1287 = vsel %vm1286, %v1284, %v1285
        %v1289 = vadd.f32 %v1281, %v1287
        %1291 = vrot.lane.b32.xlu0 %v1224, 64
        %v1292 = vpop.permute.xlu0 %1291
        %v1293 = vrot.slane %v1292, 1
        %vm1294 = vcmask 523264
        %v1295 = vsel %vm1294, %v1292, %v1293
        %v1297 = vadd.f32 %v1289, %v1295
        %1299 = vrot.lane.b32.xlu0 %v1244, 48
        %v1300 = vpop.permute.xlu0 %1299
        %v1301 = vrot.slane %v1300, 1
        %vm1302 = vcmask 392192
        %v1303 = vsel %vm1302, %v1300, %v1301
        %v1305 = vadd.f32 %v1297, %v1303
        %1307 = vrot.lane.b32.xlu0 %v1264, 32
        %v1308 = vpop.permute.xlu0 %1307
        %v1309 = vrot.slane %v1308, 1
        %vm1310 = vcmask 261120
        %v1311 = vsel %vm1310, %v1308, %v1309
        %v1313 = vadd.f32 %v1305, %v1311
        %v1314 = vxor.u32 %v1313, 2147483648
        %v1315 = vmul.f32 %v1314, 1.442695
        %v1316 = vpow.pop %v1315
        %v1317 = vadd.f32 %v1316, 1.0
        %v1318 = vrcp.pop %v1317
        %v1319 = vmul.f32 %v1317, %v1318
        %v1320 = vsub.f32 1.0, %v1319
        %v1321 = vmul.f32 %v1318, %v1320
        %v1322 = vadd.f32 %v1318, %v1321
        %vm1323 = vweird.f32 %v1317
        %vm1324 = vweird.f32 %v1318
        %vm1325 = vmor %vm1323, %vm1324
        %v1326 = vsel %vm1325, %v1318, %v1322
        %v1327 = vand.u32 2147483647, %v1317
        %vm1328 = vcmp.eq.f32.partialorder %v1327, 8.507059e+37
        %v1329 = vand.u32 %v1317, 2147483648
        %v1330 = vor.u32 1.1754944e-38, %v1329
        %v1331 = vsel %vm1328, %v1330, %v1326
        %v1332 = vmul.f32 1.0, %v1331
        %v1334 = vperm.slane %v1332, 0
        %v1335 = vperm.slane %v1332, 1
        %v1336 = vrot.slane %v1335, 4
        %v1337 = vsel %vm225, %v1334, %v1336
        %v1339 = vmul.f32 %v218, %v1337
        %1340 = vst [vmem:[%s217] sm:$0xff] %v1339
        %s1341 = sand.u32 %s98, 1
        %s1342 = scalar_lea.sflag [#allocation6], %s1341
        %s1343 = sand.u32 %s98, 1
        %s1344 = smul.addr %s1343, 8
        %s1345 = scalar_lea.vmem [#allocation11], %s1344
        // Predicated region
        $region45: #{tpu_custom_call.1} parent=31 // pred_check
          %p1346 = pneg %p108
        $region46: #{tpu_custom_call.1} parent=31 // pred_check_branch
          %1348 = sbr.rel (%p1346) target = $region48
        $region47: #{tpu_custom_call.1} parent=31 // pred_region
          %1350 = vsyncadd %s1342, 0
          %s1351 = smul.addr %s22, 2
          %s1352 = smul.addr %s1351, 4
          %s1353 = scalar_lea.hbm %s3, %s1352
          %s1355 = sshll.u32 %s1345, 4
          %s1356 = int_to_ptr.vmem [resolvable:$true] %s1355
          %s1357 = sshll.u32 %s1353, 4
          %s1358 = int_to_ptr.hbm [resolvable:$true] %s1357
          %1360 = dma.vmem_to_hbm [thread:$0]  %s1356, 128, %s1358, %s1342
        $region48: #{tpu_custom_call.1} parent=31 // pred_fallthru
          _
      $region32: #{tpu_custom_call.1} parent=5 // pred_fallthru
        _
      %p1361 = scmp.le.s32.totalorder 2, %s17
      // Predicated region
      $region49: #{tpu_custom_call.1} parent=5 // pred_check
        %p1362 = pneg %p1361
      $region50: #{tpu_custom_call.1} parent=5 // pred_check_branch
        %1364 = sbr.rel (%p1362) target = $region52
      $region51: #{tpu_custom_call.1} parent=5 // pred_region
        %s1365 = ssub.s32 %s17, 2
        // Predicated region
        $region53: #{tpu_custom_call.1} parent=51 // pred_check
          %p1366 = pneg %p114
        $region54: #{tpu_custom_call.1} parent=51 // pred_check_branch
          %1368 = sbr.rel (%p1366) target = $region56
        $region55: #{tpu_custom_call.1} parent=51 // pred_region
          %s1369 = sand.u32 %s99, 1
          %s1370 = scalar_lea.sflag [#allocation6], %s1369
          %s1371 = sand.u32 %s99, 1
          %s1372 = smul.addr %s1371, 8
          %s1373 = scalar_lea.vmem [#allocation11], %s1372
          %1375 = dma.done %s1370, 128
        $region56: #{tpu_custom_call.1} parent=51 // pred_fallthru
          _
      $region52: #{tpu_custom_call.1} parent=5 // pred_fallthru
        _
    $region6: #{tpu_custom_call.1} parent=1 // loop_footer
      %s21 = sadd.s32 1, %s17
    $region7: #{tpu_custom_call.1} parent=1 // loop_footer_branch
      %16 = sbr.rel target = $region3
    $region8: #{tpu_custom_call.1} parent=1 // loop_exit
      _
    %1376 = vsyncpa [#allocation5], 1
    %s1377 = scalar_lea.sflag [#allocation5], 1
    %1378 = vsyncpa %s1377, 1
    %1379 = vsyncpa [#allocation10], 1
    %s1380 = scalar_lea.sflag [#allocation10], 1
    %1381 = vsyncpa %s1380, 1
    %1382 = vsyncpa [#allocation6], 1
    %s1383 = scalar_lea.sflag [#allocation6], 1
    %1384 = vsyncpa %s1383, 1
    %1385 = vsyncpa [#allocation7], 1
    %s1386 = scalar_lea.sflag [#allocation7], 1
    %1387 = vsyncpa %s1386, 1

</llo_original>
